<compile_context>
chip_gen: v7x
topology: tpu7x:2x2x1
jax: 0.10.0
libtpu: 0.0.40
codegen_flags: <defaults>
</compile_context>

<pallas_src>
import jax
import jax.numpy as jnp
import numpy as np
from jax import lax
from jax.experimental import pallas as pl
from jax.experimental.pallas import tpu as pltpu


def _make_lstm_kernel(num_layers, seq_len, hidden, batch):
    L, S, H, B = num_layers, seq_len, hidden, batch

    def kernel(*refs):
        # inputs
        x_ref, h0_ref, c0_ref = refs[0:3]
        wih_refs = refs[3:3 + L]              # per layer: (Fin, 4H)  (pre-transposed)
        whh_refs = refs[3 + L:3 + 2 * L]      # per layer: (H, 4H)    (pre-transposed)
        b_refs = refs[3 + 2 * L:3 + 3 * L]    # per layer: (1, 4H)    (b_ih + b_hh)
        wlin_ref = refs[3 + 3 * L]            # (1, H)
        blin_ref = refs[3 + 3 * L + 1]        # (1, 1)
        # outputs
        out_ref, hn_ref, cn_ref = refs[3 + 3 * L + 2:3 + 3 * L + 5]
        # scratch
        seq_buf = refs[-2]                    # VMEM (S, B, H)  current layer's h_t seq
        pre_buf = refs[-1]                    # VMEM (S, B, 4H) hoisted input projection

        h_last = None
        for l in range(L):  # num_layers is static -> Python unroll
            # Hoisted input projection + bias for ALL timesteps of this layer:
            # one well-shaped MXU GEMM instead of S tiny ones on the critical path.
            if l == 0:
                inp = x_ref[...].reshape(S * B, x_ref.shape[-1])   # (S*B, F)
            else:
                inp = seq_buf[...].reshape(S * B, H)               # (S*B, H)
            pre = (jnp.dot(inp, wih_refs[l][...],
                           preferred_element_type=jnp.float32)
                   + b_refs[l][...])                               # (S*B, 4H)
            pre_buf[...] = pre.reshape(S, B, 4 * H)

            def step(t, carry, l=l):
                h, c = carry
                # Only the recurrent matmul remains on the serial path.
                gates = pre_buf[t] + jnp.dot(h, whh_refs[l][...],
                                             preferred_element_type=jnp.float32)
                # Full-vreg activations: 2 EUP ops over the whole (B, 4H) gate vreg.
                sig = jax.nn.sigmoid(gates)
                th = jnp.tanh(gates)
                i = sig[:, 0 * H:1 * H]
                f = sig[:, 1 * H:2 * H]
                g = th[:, 2 * H:3 * H]
                o = sig[:, 3 * H:4 * H]
                c_new = f * c + i * g
                h_new = o * jnp.tanh(c_new)
                if l < L - 1:          # last layer's per-step outputs are never read
                    seq_buf[t] = h_new
                return h_new, c_new

            h_fin, c_fin = lax.fori_loop(0, S, step, (h0_ref[l], c0_ref[l]),
                                         unroll=True)
            hn_ref[l] = h_fin
            cn_ref[l] = c_fin
            h_last = h_fin

        # Final linear head on the VPU (avoid an N=1 MXU matmul + FIFO drain).
        out_ref[...] = (jnp.sum(h_last * wlin_ref[...], axis=-1, keepdims=True)
                        + blin_ref[...])

    return kernel


def stacked_lstm_forward(x, h, c, params):
    """x: (B, S, F) float32; h, c: (L, B, H) float32. Returns (out(B,), (hn, cn))."""
    B, S, F = x.shape
    L, _, H = h.shape

    # Pad batch to a full sublane tile (8): removes masked partial stores and makes
    # the hoisted (S*B, Fin) GEMM and all reshapes tile-aligned.
    Bp = max(8, ((B + 7) // 8) * 8)
    if Bp != B:
        x = jnp.pad(x, ((0, Bp - B), (0, 0), (0, 0)))
        h = jnp.pad(h, ((0, 0), (0, Bp - B), (0, 0)))
        c = jnp.pad(c, ((0, 0), (0, Bp - B), (0, 0)))

    x_t = jnp.transpose(x, (1, 0, 2))  # (S, Bp, F)

    wihT = [params[f"w_ih_{l}"].T for l in range(L)]                     # (Fin, 4H)
    whhT = [params[f"w_hh_{l}"].T for l in range(L)]                     # (H, 4H)
    bs = [(params[f"b_ih_{l}"] + params[f"b_hh_{l}"]).reshape(1, 4 * H)  # (1, 4H)
          for l in range(L)]
    wlin = params["w_lin"].reshape(1, H)                                 # (1, H)
    blin = params["b_lin"].reshape(1, 1)                                 # (1, 1)

    inputs = [x_t, h, c] + wihT + whhT + bs + [wlin, blin]
    vmem = pl.BlockSpec(memory_space=pltpu.MemorySpace.VMEM)

    out, hn, cn = pl.pallas_call(
        _make_lstm_kernel(L, S, H, Bp),
        out_shape=(
            jax.ShapeDtypeStruct((Bp, 1), jnp.float32),
            jax.ShapeDtypeStruct((L, Bp, H), jnp.float32),
            jax.ShapeDtypeStruct((L, Bp, H), jnp.float32),
        ),
        in_specs=[vmem] * len(inputs),
        out_specs=(vmem, vmem, vmem),
        scratch_shapes=[
            pltpu.VMEM((S, Bp, H), jnp.float32),       # seq_buf (layer-to-layer h_t)
            pltpu.VMEM((S, Bp, 4 * H), jnp.float32),   # pre_buf (hoisted input GEMM)
        ],
        # TODO(synk): for production S/B/H, chunk the sequence (double-buffered DMA)
        #             so seq_buf/pre_buf fit v7x's 64 MiB VMEM; trivial at toy shapes.
        compiler_params=pltpu.CompilerParams(vmem_limit_bytes=64 * 1024 * 1024),
    )(*inputs)
    return out[:B].reshape(-1), (hn[:, :B], cn[:, :B])


def stacked_lstm_reference(x, h, c, params):
    """Pure-JAX reference matching PyTorch nn.LSTM + Linear semantics."""
    B, S, F = x.shape
    L, _, H = h.shape
    layer_in = x
    hn = []
    cn = []
    for l in range(L):
        w_ih = params[f"w_ih_{l}"]
        w_hh = params[f"w_hh_{l}"]
        b = params[f"b_ih_{l}"] + params[f"b_hh_{l}"]
        hs, cs = h[l], c[l]
        outs = []
        for t in range(S):
            xt = layer_in[:, t, :]
            gates = xt @ w_ih.T + hs @ w_hh.T + b
            i = jax.nn.sigmoid(gates[:, 0 * H:1 * H])
            f = jax.nn.sigmoid(gates[:, 1 * H:2 * H])
            g = jnp.tanh(gates[:, 2 * H:3 * H])
            o = jax.nn.sigmoid(gates[:, 3 * H:4 * H])
            cs = f * cs + i * g
            hs = o * jnp.tanh(cs)
            outs.append(hs)
        layer_in = jnp.stack(outs, axis=1)
        hn.append(hs)
        cn.append(cs)
    hn = jnp.stack(hn, axis=0)
    cn = jnp.stack(cn, axis=0)
    out = (hn[-1] @ params["w_lin"].T + params["b_lin"]).reshape(-1)
    return out, (hn, cn)


def init_params(key, features, hidden, num_layers):
    """Deterministic init mirroring PyTorch LSTM param shapes (uniform ±1/sqrt(H))."""
    scale = 1.0 / np.sqrt(hidden)
    params = {}
    for l in range(num_layers):
        fin = features if l == 0 else hidden
        key, k1, k2, k3, k4 = jax.random.split(key, 5)
        params[f"w_ih_{l}"] = jax.random.uniform(k1, (4 * hidden, fin),
                                                 jnp.float32, -scale, scale)
        params[f"w_hh_{l}"] = jax.random.uniform(k2, (4 * hidden, hidden),
                                                 jnp.float32, -scale, scale)
        params[f"b_ih_{l}"] = jax.random.uniform(k3, (4 * hidden,),
                                                 jnp.float32, -scale, scale)
        params[f"b_hh_{l}"] = jax.random.uniform(k4, (4 * hidden,),
                                                 jnp.float32, -scale, scale)
    key, k1, k2 = jax.random.split(key, 3)
    params["w_lin"] = jax.random.uniform(k1, (1, hidden), jnp.float32, -scale, scale)
    params["b_lin"] = jax.random.uniform(k2, (1,), jnp.float32, -scale, scale)
    return params


if __name__ == "__main__":
    # small shapes consistent with the module's forward
    B, S, F, H, L = 2, 8, 8, 32, 2

    key = jax.random.PRNGKey(0)
    kx, kh, kc, kp = jax.random.split(key, 4)
    x = jax.random.normal(kx, (B, S, F), jnp.float32)
    h0 = jax.random.normal(kh, (L, B, H), jnp.float32)
    c0 = jax.random.normal(kc, (L, B, H), jnp.float32)
    params = init_params(kp, F, H, L)

    out, (hn, cn) = stacked_lstm_forward(x, h0, c0, params)
    jax.block_until_ready((out, hn, cn))

    # correctness check against pure-JAX reference
    out_r, (hn_r, cn_r) = stacked_lstm_reference(x, h0, c0, params)
    np.testing.assert_allclose(np.asarray(out), np.asarray(out_r), rtol=1e-5, atol=1e-5)
    np.testing.assert_allclose(np.asarray(hn), np.asarray(hn_r), rtol=1e-5, atol=1e-5)
    np.testing.assert_allclose(np.asarray(cn), np.asarray(cn_r), rtol=1e-5, atol=1e-5)

    print("KERNEL_OK")
</pallas_src>

<mosaic_0001>
module attributes {stable_mosaic.version = 11 : i64} {
  func.func @kernel(%arg0: memref<8x8x8xf32, #tpu.memory_space<vmem>>, %arg1: memref<2x8x32xf32, #tpu.memory_space<vmem>>, %arg2: memref<2x8x32xf32, #tpu.memory_space<vmem>>, %arg3: memref<8x128xf32, #tpu.memory_space<vmem>>, %arg4: memref<32x128xf32, #tpu.memory_space<vmem>>, %arg5: memref<32x128xf32, #tpu.memory_space<vmem>>, %arg6: memref<32x128xf32, #tpu.memory_space<vmem>>, %arg7: memref<1x128xf32, #tpu.memory_space<vmem>>, %arg8: memref<1x128xf32, #tpu.memory_space<vmem>>, %arg9: memref<1x32xf32, #tpu.memory_space<vmem>>, %arg10: memref<1x1xf32, #tpu.memory_space<vmem>>, %arg11: memref<8x1xf32, #tpu.memory_space<vmem>>, %arg12: memref<2x8x32xf32, #tpu.memory_space<vmem>>, %arg13: memref<2x8x32xf32, #tpu.memory_space<vmem>>, %arg14: memref<8x8x32xf32, #tpu.memory_space<vmem>>, %arg15: memref<8x8x128xf32, #tpu.memory_space<vmem>>) attributes {dimension_semantics = [], scalar_prefetch = 0 : i64, scratch_operands = 2 : i64, tpu.core_type = #tpu.core_type<tc>} {
    %c0 = arith.constant 0 : index
    %c0_0 = arith.constant 0 : index
    %c0_1 = arith.constant 0 : index
    %0 = vector.load %arg0[%c0, %c0_0, %c0_1] : memref<8x8x8xf32, #tpu.memory_space<vmem>>, vector<8x8x8xf32>
    %1 = vector.shape_cast %0 : vector<8x8x8xf32> to vector<64x8xf32>
    %c0_2 = arith.constant 0 : index
    %c0_3 = arith.constant 0 : index
    %2 = vector.load %arg3[%c0_2, %c0_3] : memref<8x128xf32, #tpu.memory_space<vmem>>, vector<8x128xf32>
    %cst = arith.constant dense<0.000000e+00> : vector<64x128xf32>
    %3 = tpu.matmul %1, %2, %cst {dimension_numbers = #tpu.dot_dimension_numbers<[1], [0], [0], [1], [0, 0, 1, 1], [], []>} : vector<64x8xf32>, vector<8x128xf32>, vector<64x128xf32> -> vector<64x128xf32>
    %c0_4 = arith.constant 0 : index
    %c0_5 = arith.constant 0 : index
    %4 = vector.load %arg7[%c0_4, %c0_5] : memref<1x128xf32, #tpu.memory_space<vmem>>, vector<1x128xf32>
    %5 = vector.broadcast %4 : vector<1x128xf32> to vector<64x128xf32>
    %6 = arith.addf %3, %5 : vector<64x128xf32>
    %7 = vector.shape_cast %6 : vector<64x128xf32> to vector<8x8x128xf32>
    %c0_6 = arith.constant 0 : index
    %c0_7 = arith.constant 0 : index
    %c0_8 = arith.constant 0 : index
    %8 = vector.load %arg15[%c0_6, %c0_7, %c0_8] : memref<8x8x128xf32, #tpu.memory_space<vmem>>, vector<8x8x128xf32>
    tpu.vector_store %arg15[%c0_6, %c0_7, %c0_8], %7 {strides = array<i32>} : memref<8x8x128xf32, #tpu.memory_space<vmem>>, vector<8x8x128xf32>,
    %c0_9 = arith.constant 0 : index
    %c0_10 = arith.constant 0 : index
    %c0_11 = arith.constant 0 : index
    %9 = vector.load %arg1[%c0_9, %c0_10, %c0_11] : memref<2x8x32xf32, #tpu.memory_space<vmem>>, vector<1x8x32xf32>
    %10 = vector.shape_cast %9 : vector<1x8x32xf32> to vector<8x32xf32>
    %c0_12 = arith.constant 0 : index
    %c0_13 = arith.constant 0 : index
    %c0_14 = arith.constant 0 : index
    %11 = vector.load %arg2[%c0_12, %c0_13, %c0_14] : memref<2x8x32xf32, #tpu.memory_space<vmem>>, vector<1x8x32xf32>
    %12 = vector.shape_cast %11 : vector<1x8x32xf32> to vector<8x32xf32>
    %c0_i32 = arith.constant 0 : i32
    %13 = arith.index_cast %c0_i32 : i32 to index
    %c0_15 = arith.constant 0 : index
    %c0_16 = arith.constant 0 : index
    %14 = vector.load %arg15[%13, %c0_15, %c0_16] : memref<8x8x128xf32, #tpu.memory_space<vmem>>, vector<1x8x128xf32>
    %15 = vector.shape_cast %14 : vector<1x8x128xf32> to vector<8x128xf32>
    %c0_17 = arith.constant 0 : index
    %c0_18 = arith.constant 0 : index
    %16 = vector.load %arg5[%c0_17, %c0_18] : memref<32x128xf32, #tpu.memory_space<vmem>>, vector<32x128xf32>
    %cst_19 = arith.constant dense<0.000000e+00> : vector<8x128xf32>
    %17 = tpu.matmul %10, %16, %cst_19 {dimension_numbers = #tpu.dot_dimension_numbers<[1], [0], [0], [1], [0, 0, 1, 1], [], []>} : vector<8x32xf32>, vector<32x128xf32>, vector<8x128xf32> -> vector<8x128xf32>
    %18 = arith.addf %15, %17 : vector<8x128xf32>
    %19 = arith.negf %18 : vector<8x128xf32>
    %20 = math.exp %19 : vector<8x128xf32>
    %cst_20 = arith.constant 1.000000e+00 : f32
    %21 = vector.broadcast %cst_20 : f32 to vector<8x128xf32>
    %22 = arith.addf %21, %20 : vector<8x128xf32>
    %23 = arith.divf %21, %22 : vector<8x128xf32>
    %24 = math.tanh %18 : vector<8x128xf32>
    %25 = vector.extract_strided_slice %23 {offsets = [0, 0], sizes = [8, 32], strides = [1, 1]} : vector<8x128xf32> to vector<8x32xf32>
    %26 = vector.extract_strided_slice %23 {offsets = [0, 32], sizes = [8, 32], strides = [1, 1]} : vector<8x128xf32> to vector<8x32xf32>
    %27 = vector.extract_strided_slice %24 {offsets = [0, 64], sizes = [8, 32], strides = [1, 1]} : vector<8x128xf32> to vector<8x32xf32>
    %28 = vector.extract_strided_slice %23 {offsets = [0, 96], sizes = [8, 32], strides = [1, 1]} : vector<8x128xf32> to vector<8x32xf32>
    %29 = arith.mulf %26, %12 : vector<8x32xf32>
    %30 = arith.mulf %25, %27 : vector<8x32xf32>
    %31 = arith.addf %29, %30 : vector<8x32xf32>
    %32 = math.tanh %31 : vector<8x32xf32>
    %33 = arith.mulf %28, %32 : vector<8x32xf32>
    %34 = arith.index_cast %c0_i32 : i32 to index
    %c0_21 = arith.constant 0 : index
    %c0_22 = arith.constant 0 : index
    %35 = vector.load %arg14[%34, %c0_21, %c0_22] : memref<8x8x32xf32, #tpu.memory_space<vmem>>, vector<1x8x32xf32>
    %36 = vector.shape_cast %35 : vector<1x8x32xf32> to vector<8x32xf32>
    %37 = vector.shape_cast %33 : vector<8x32xf32> to vector<1x8x32xf32>
    tpu.vector_store %arg14[%34, %c0_21, %c0_22], %37 {strides = array<i32>} : memref<8x8x32xf32, #tpu.memory_space<vmem>>, vector<1x8x32xf32>,
    %c1_i32 = arith.constant 1 : i32
    %38 = arith.index_cast %c1_i32 : i32 to index
    %c0_23 = arith.constant 0 : index
    %c0_24 = arith.constant 0 : index
    %39 = vector.load %arg15[%38, %c0_23, %c0_24] : memref<8x8x128xf32, #tpu.memory_space<vmem>>, vector<1x8x128xf32>
    %40 = vector.shape_cast %39 : vector<1x8x128xf32> to vector<8x128xf32>
    %c0_25 = arith.constant 0 : index
    %c0_26 = arith.constant 0 : index
    %41 = vector.load %arg5[%c0_25, %c0_26] : memref<32x128xf32, #tpu.memory_space<vmem>>, vector<32x128xf32>
    %cst_27 = arith.constant dense<0.000000e+00> : vector<8x128xf32>
    %42 = tpu.matmul %33, %41, %cst_27 {dimension_numbers = #tpu.dot_dimension_numbers<[1], [0], [0], [1], [0, 0, 1, 1], [], []>} : vector<8x32xf32>, vector<32x128xf32>, vector<8x128xf32> -> vector<8x128xf32>
    %43 = arith.addf %40, %42 : vector<8x128xf32>
    %44 = arith.negf %43 : vector<8x128xf32>
    %45 = math.exp %44 : vector<8x128xf32>
    %cst_28 = arith.constant 1.000000e+00 : f32
    %46 = vector.broadcast %cst_28 : f32 to vector<8x128xf32>
    %47 = arith.addf %46, %45 : vector<8x128xf32>
    %48 = arith.divf %46, %47 : vector<8x128xf32>
    %49 = math.tanh %43 : vector<8x128xf32>
    %50 = vector.extract_strided_slice %48 {offsets = [0, 0], sizes = [8, 32], strides = [1, 1]} : vector<8x128xf32> to vector<8x32xf32>
    %51 = vector.extract_strided_slice %48 {offsets = [0, 32], sizes = [8, 32], strides = [1, 1]} : vector<8x128xf32> to vector<8x32xf32>
    %52 = vector.extract_strided_slice %49 {offsets = [0, 64], sizes = [8, 32], strides = [1, 1]} : vector<8x128xf32> to vector<8x32xf32>
    %53 = vector.extract_strided_slice %48 {offsets = [0, 96], sizes = [8, 32], strides = [1, 1]} : vector<8x128xf32> to vector<8x32xf32>
    %54 = arith.mulf %51, %31 : vector<8x32xf32>
    %55 = arith.mulf %50, %52 : vector<8x32xf32>
    %56 = arith.addf %54, %55 : vector<8x32xf32>
    %57 = math.tanh %56 : vector<8x32xf32>
    %58 = arith.mulf %53, %57 : vector<8x32xf32>
    %59 = arith.index_cast %c1_i32 : i32 to index
    %c0_29 = arith.constant 0 : index
    %c0_30 = arith.constant 0 : index
    %60 = vector.load %arg14[%59, %c0_29, %c0_30] : memref<8x8x32xf32, #tpu.memory_space<vmem>>, vector<1x8x32xf32>
    %61 = vector.shape_cast %60 : vector<1x8x32xf32> to vector<8x32xf32>
    %62 = vector.shape_cast %58 : vector<8x32xf32> to vector<1x8x32xf32>
    tpu.vector_store %arg14[%59, %c0_29, %c0_30], %62 {strides = array<i32>} : memref<8x8x32xf32, #tpu.memory_space<vmem>>, vector<1x8x32xf32>,
    %c2_i32 = arith.constant 2 : i32
    %63 = arith.index_cast %c2_i32 : i32 to index
    %c0_31 = arith.constant 0 : index
    %c0_32 = arith.constant 0 : index
    %64 = vector.load %arg15[%63, %c0_31, %c0_32] : memref<8x8x128xf32, #tpu.memory_space<vmem>>, vector<1x8x128xf32>
    %65 = vector.shape_cast %64 : vector<1x8x128xf32> to vector<8x128xf32>
    %c0_33 = arith.constant 0 : index
    %c0_34 = arith.constant 0 : index
    %66 = vector.load %arg5[%c0_33, %c0_34] : memref<32x128xf32, #tpu.memory_space<vmem>>, vector<32x128xf32>
    %cst_35 = arith.constant dense<0.000000e+00> : vector<8x128xf32>
    %67 = tpu.matmul %58, %66, %cst_35 {dimension_numbers = #tpu.dot_dimension_numbers<[1], [0], [0], [1], [0, 0, 1, 1], [], []>} : vector<8x32xf32>, vector<32x128xf32>, vector<8x128xf32> -> vector<8x128xf32>
    %68 = arith.addf %65, %67 : vector<8x128xf32>
    %69 = arith.negf %68 : vector<8x128xf32>
    %70 = math.exp %69 : vector<8x128xf32>
    %cst_36 = arith.constant 1.000000e+00 : f32
    %71 = vector.broadcast %cst_36 : f32 to vector<8x128xf32>
    %72 = arith.addf %71, %70 : vector<8x128xf32>
    %73 = arith.divf %71, %72 : vector<8x128xf32>
    %74 = math.tanh %68 : vector<8x128xf32>
    %75 = vector.extract_strided_slice %73 {offsets = [0, 0], sizes = [8, 32], strides = [1, 1]} : vector<8x128xf32> to vector<8x32xf32>
    %76 = vector.extract_strided_slice %73 {offsets = [0, 32], sizes = [8, 32], strides = [1, 1]} : vector<8x128xf32> to vector<8x32xf32>
    %77 = vector.extract_strided_slice %74 {offsets = [0, 64], sizes = [8, 32], strides = [1, 1]} : vector<8x128xf32> to vector<8x32xf32>
    %78 = vector.extract_strided_slice %73 {offsets = [0, 96], sizes = [8, 32], strides = [1, 1]} : vector<8x128xf32> to vector<8x32xf32>
    %79 = arith.mulf %76, %56 : vector<8x32xf32>
    %80 = arith.mulf %75, %77 : vector<8x32xf32>
    %81 = arith.addf %79, %80 : vector<8x32xf32>
    %82 = math.tanh %81 : vector<8x32xf32>
    %83 = arith.mulf %78, %82 : vector<8x32xf32>
    %84 = arith.index_cast %c2_i32 : i32 to index
    %c0_37 = arith.constant 0 : index
    %c0_38 = arith.constant 0 : index
    %85 = vector.load %arg14[%84, %c0_37, %c0_38] : memref<8x8x32xf32, #tpu.memory_space<vmem>>, vector<1x8x32xf32>
    %86 = vector.shape_cast %85 : vector<1x8x32xf32> to vector<8x32xf32>
    %87 = vector.shape_cast %83 : vector<8x32xf32> to vector<1x8x32xf32>
    tpu.vector_store %arg14[%84, %c0_37, %c0_38], %87 {strides = array<i32>} : memref<8x8x32xf32, #tpu.memory_space<vmem>>, vector<1x8x32xf32>,
    %c3_i32 = arith.constant 3 : i32
    %88 = arith.index_cast %c3_i32 : i32 to index
    %c0_39 = arith.constant 0 : index
    %c0_40 = arith.constant 0 : index
    %89 = vector.load %arg15[%88, %c0_39, %c0_40] : memref<8x8x128xf32, #tpu.memory_space<vmem>>, vector<1x8x128xf32>
    %90 = vector.shape_cast %89 : vector<1x8x128xf32> to vector<8x128xf32>
    %c0_41 = arith.constant 0 : index
    %c0_42 = arith.constant 0 : index
    %91 = vector.load %arg5[%c0_41, %c0_42] : memref<32x128xf32, #tpu.memory_space<vmem>>, vector<32x128xf32>
    %cst_43 = arith.constant dense<0.000000e+00> : vector<8x128xf32>
    %92 = tpu.matmul %83, %91, %cst_43 {dimension_numbers = #tpu.dot_dimension_numbers<[1], [0], [0], [1], [0, 0, 1, 1], [], []>} : vector<8x32xf32>, vector<32x128xf32>, vector<8x128xf32> -> vector<8x128xf32>
    %93 = arith.addf %90, %92 : vector<8x128xf32>
    %94 = arith.negf %93 : vector<8x128xf32>
    %95 = math.exp %94 : vector<8x128xf32>
    %cst_44 = arith.constant 1.000000e+00 : f32
    %96 = vector.broadcast %cst_44 : f32 to vector<8x128xf32>
    %97 = arith.addf %96, %95 : vector<8x128xf32>
    %98 = arith.divf %96, %97 : vector<8x128xf32>
    %99 = math.tanh %93 : vector<8x128xf32>
    %100 = vector.extract_strided_slice %98 {offsets = [0, 0], sizes = [8, 32], strides = [1, 1]} : vector<8x128xf32> to vector<8x32xf32>
    %101 = vector.extract_strided_slice %98 {offsets = [0, 32], sizes = [8, 32], strides = [1, 1]} : vector<8x128xf32> to vector<8x32xf32>
    %102 = vector.extract_strided_slice %99 {offsets = [0, 64], sizes = [8, 32], strides = [1, 1]} : vector<8x128xf32> to vector<8x32xf32>
    %103 = vector.extract_strided_slice %98 {offsets = [0, 96], sizes = [8, 32], strides = [1, 1]} : vector<8x128xf32> to vector<8x32xf32>
    %104 = arith.mulf %101, %81 : vector<8x32xf32>
    %105 = arith.mulf %100, %102 : vector<8x32xf32>
    %106 = arith.addf %104, %105 : vector<8x32xf32>
    %107 = math.tanh %106 : vector<8x32xf32>
    %108 = arith.mulf %103, %107 : vector<8x32xf32>
    %109 = arith.index_cast %c3_i32 : i32 to index
    %c0_45 = arith.constant 0 : index
    %c0_46 = arith.constant 0 : index
    %110 = vector.load %arg14[%109, %c0_45, %c0_46] : memref<8x8x32xf32, #tpu.memory_space<vmem>>, vector<1x8x32xf32>
    %111 = vector.shape_cast %110 : vector<1x8x32xf32> to vector<8x32xf32>
    %112 = vector.shape_cast %108 : vector<8x32xf32> to vector<1x8x32xf32>
    tpu.vector_store %arg14[%109, %c0_45, %c0_46], %112 {strides = array<i32>} : memref<8x8x32xf32, #tpu.memory_space<vmem>>, vector<1x8x32xf32>,
    %c4_i32 = arith.constant 4 : i32
    %113 = arith.index_cast %c4_i32 : i32 to index
    %c0_47 = arith.constant 0 : index
    %c0_48 = arith.constant 0 : index
    %114 = vector.load %arg15[%113, %c0_47, %c0_48] : memref<8x8x128xf32, #tpu.memory_space<vmem>>, vector<1x8x128xf32>
    %115 = vector.shape_cast %114 : vector<1x8x128xf32> to vector<8x128xf32>
    %c0_49 = arith.constant 0 : index
    %c0_50 = arith.constant 0 : index
    %116 = vector.load %arg5[%c0_49, %c0_50] : memref<32x128xf32, #tpu.memory_space<vmem>>, vector<32x128xf32>
    %cst_51 = arith.constant dense<0.000000e+00> : vector<8x128xf32>
    %117 = tpu.matmul %108, %116, %cst_51 {dimension_numbers = #tpu.dot_dimension_numbers<[1], [0], [0], [1], [0, 0, 1, 1], [], []>} : vector<8x32xf32>, vector<32x128xf32>, vector<8x128xf32> -> vector<8x128xf32>
    %118 = arith.addf %115, %117 : vector<8x128xf32>
    %119 = arith.negf %118 : vector<8x128xf32>
    %120 = math.exp %119 : vector<8x128xf32>
    %cst_52 = arith.constant 1.000000e+00 : f32
    %121 = vector.broadcast %cst_52 : f32 to vector<8x128xf32>
    %122 = arith.addf %121, %120 : vector<8x128xf32>
    %123 = arith.divf %121, %122 : vector<8x128xf32>
    %124 = math.tanh %118 : vector<8x128xf32>
    %125 = vector.extract_strided_slice %123 {offsets = [0, 0], sizes = [8, 32], strides = [1, 1]} : vector<8x128xf32> to vector<8x32xf32>
    %126 = vector.extract_strided_slice %123 {offsets = [0, 32], sizes = [8, 32], strides = [1, 1]} : vector<8x128xf32> to vector<8x32xf32>
    %127 = vector.extract_strided_slice %124 {offsets = [0, 64], sizes = [8, 32], strides = [1, 1]} : vector<8x128xf32> to vector<8x32xf32>
    %128 = vector.extract_strided_slice %123 {offsets = [0, 96], sizes = [8, 32], strides = [1, 1]} : vector<8x128xf32> to vector<8x32xf32>
    %129 = arith.mulf %126, %106 : vector<8x32xf32>
    %130 = arith.mulf %125, %127 : vector<8x32xf32>
    %131 = arith.addf %129, %130 : vector<8x32xf32>
    %132 = math.tanh %131 : vector<8x32xf32>
    %133 = arith.mulf %128, %132 : vector<8x32xf32>
    %134 = arith.index_cast %c4_i32 : i32 to index
    %c0_53 = arith.constant 0 : index
    %c0_54 = arith.constant 0 : index
    %135 = vector.load %arg14[%134, %c0_53, %c0_54] : memref<8x8x32xf32, #tpu.memory_space<vmem>>, vector<1x8x32xf32>
    %136 = vector.shape_cast %135 : vector<1x8x32xf32> to vector<8x32xf32>
    %137 = vector.shape_cast %133 : vector<8x32xf32> to vector<1x8x32xf32>
    tpu.vector_store %arg14[%134, %c0_53, %c0_54], %137 {strides = array<i32>} : memref<8x8x32xf32, #tpu.memory_space<vmem>>, vector<1x8x32xf32>,
    %c5_i32 = arith.constant 5 : i32
    %138 = arith.index_cast %c5_i32 : i32 to index
    %c0_55 = arith.constant 0 : index
    %c0_56 = arith.constant 0 : index
    %139 = vector.load %arg15[%138, %c0_55, %c0_56] : memref<8x8x128xf32, #tpu.memory_space<vmem>>, vector<1x8x128xf32>
    %140 = vector.shape_cast %139 : vector<1x8x128xf32> to vector<8x128xf32>
    %c0_57 = arith.constant 0 : index
    %c0_58 = arith.constant 0 : index
    %141 = vector.load %arg5[%c0_57, %c0_58] : memref<32x128xf32, #tpu.memory_space<vmem>>, vector<32x128xf32>
    %cst_59 = arith.constant dense<0.000000e+00> : vector<8x128xf32>
    %142 = tpu.matmul %133, %141, %cst_59 {dimension_numbers = #tpu.dot_dimension_numbers<[1], [0], [0], [1], [0, 0, 1, 1], [], []>} : vector<8x32xf32>, vector<32x128xf32>, vector<8x128xf32> -> vector<8x128xf32>
    %143 = arith.addf %140, %142 : vector<8x128xf32>
    %144 = arith.negf %143 : vector<8x128xf32>
    %145 = math.exp %144 : vector<8x128xf32>
    %cst_60 = arith.constant 1.000000e+00 : f32
    %146 = vector.broadcast %cst_60 : f32 to vector<8x128xf32>
    %147 = arith.addf %146, %145 : vector<8x128xf32>
    %148 = arith.divf %146, %147 : vector<8x128xf32>
    %149 = math.tanh %143 : vector<8x128xf32>
    %150 = vector.extract_strided_slice %148 {offsets = [0, 0], sizes = [8, 32], strides = [1, 1]} : vector<8x128xf32> to vector<8x32xf32>
    %151 = vector.extract_strided_slice %148 {offsets = [0, 32], sizes = [8, 32], strides = [1, 1]} : vector<8x128xf32> to vector<8x32xf32>
    %152 = vector.extract_strided_slice %149 {offsets = [0, 64], sizes = [8, 32], strides = [1, 1]} : vector<8x128xf32> to vector<8x32xf32>
    %153 = vector.extract_strided_slice %148 {offsets = [0, 96], sizes = [8, 32], strides = [1, 1]} : vector<8x128xf32> to vector<8x32xf32>
    %154 = arith.mulf %151, %131 : vector<8x32xf32>
    %155 = arith.mulf %150, %152 : vector<8x32xf32>
    %156 = arith.addf %154, %155 : vector<8x32xf32>
    %157 = math.tanh %156 : vector<8x32xf32>
    %158 = arith.mulf %153, %157 : vector<8x32xf32>
    %159 = arith.index_cast %c5_i32 : i32 to index
    %c0_61 = arith.constant 0 : index
    %c0_62 = arith.constant 0 : index
    %160 = vector.load %arg14[%159, %c0_61, %c0_62] : memref<8x8x32xf32, #tpu.memory_space<vmem>>, vector<1x8x32xf32>
    %161 = vector.shape_cast %160 : vector<1x8x32xf32> to vector<8x32xf32>
    %162 = vector.shape_cast %158 : vector<8x32xf32> to vector<1x8x32xf32>
    tpu.vector_store %arg14[%159, %c0_61, %c0_62], %162 {strides = array<i32>} : memref<8x8x32xf32, #tpu.memory_space<vmem>>, vector<1x8x32xf32>,
    %c6_i32 = arith.constant 6 : i32
    %163 = arith.index_cast %c6_i32 : i32 to index
    %c0_63 = arith.constant 0 : index
    %c0_64 = arith.constant 0 : index
    %164 = vector.load %arg15[%163, %c0_63, %c0_64] : memref<8x8x128xf32, #tpu.memory_space<vmem>>, vector<1x8x128xf32>
    %165 = vector.shape_cast %164 : vector<1x8x128xf32> to vector<8x128xf32>
    %c0_65 = arith.constant 0 : index
    %c0_66 = arith.constant 0 : index
    %166 = vector.load %arg5[%c0_65, %c0_66] : memref<32x128xf32, #tpu.memory_space<vmem>>, vector<32x128xf32>
    %cst_67 = arith.constant dense<0.000000e+00> : vector<8x128xf32>
    %167 = tpu.matmul %158, %166, %cst_67 {dimension_numbers = #tpu.dot_dimension_numbers<[1], [0], [0], [1], [0, 0, 1, 1], [], []>} : vector<8x32xf32>, vector<32x128xf32>, vector<8x128xf32> -> vector<8x128xf32>
    %168 = arith.addf %165, %167 : vector<8x128xf32>
    %169 = arith.negf %168 : vector<8x128xf32>
    %170 = math.exp %169 : vector<8x128xf32>
    %cst_68 = arith.constant 1.000000e+00 : f32
    %171 = vector.broadcast %cst_68 : f32 to vector<8x128xf32>
    %172 = arith.addf %171, %170 : vector<8x128xf32>
    %173 = arith.divf %171, %172 : vector<8x128xf32>
    %174 = math.tanh %168 : vector<8x128xf32>
    %175 = vector.extract_strided_slice %173 {offsets = [0, 0], sizes = [8, 32], strides = [1, 1]} : vector<8x128xf32> to vector<8x32xf32>
    %176 = vector.extract_strided_slice %173 {offsets = [0, 32], sizes = [8, 32], strides = [1, 1]} : vector<8x128xf32> to vector<8x32xf32>
    %177 = vector.extract_strided_slice %174 {offsets = [0, 64], sizes = [8, 32], strides = [1, 1]} : vector<8x128xf32> to vector<8x32xf32>
    %178 = vector.extract_strided_slice %173 {offsets = [0, 96], sizes = [8, 32], strides = [1, 1]} : vector<8x128xf32> to vector<8x32xf32>
    %179 = arith.mulf %176, %156 : vector<8x32xf32>
    %180 = arith.mulf %175, %177 : vector<8x32xf32>
    %181 = arith.addf %179, %180 : vector<8x32xf32>
    %182 = math.tanh %181 : vector<8x32xf32>
    %183 = arith.mulf %178, %182 : vector<8x32xf32>
    %184 = arith.index_cast %c6_i32 : i32 to index
    %c0_69 = arith.constant 0 : index
    %c0_70 = arith.constant 0 : index
    %185 = vector.load %arg14[%184, %c0_69, %c0_70] : memref<8x8x32xf32, #tpu.memory_space<vmem>>, vector<1x8x32xf32>
    %186 = vector.shape_cast %185 : vector<1x8x32xf32> to vector<8x32xf32>
    %187 = vector.shape_cast %183 : vector<8x32xf32> to vector<1x8x32xf32>
    tpu.vector_store %arg14[%184, %c0_69, %c0_70], %187 {strides = array<i32>} : memref<8x8x32xf32, #tpu.memory_space<vmem>>, vector<1x8x32xf32>,
    %c7_i32 = arith.constant 7 : i32
    %188 = arith.index_cast %c7_i32 : i32 to index
    %c0_71 = arith.constant 0 : index
    %c0_72 = arith.constant 0 : index
    %189 = vector.load %arg15[%188, %c0_71, %c0_72] : memref<8x8x128xf32, #tpu.memory_space<vmem>>, vector<1x8x128xf32>
    %190 = vector.shape_cast %189 : vector<1x8x128xf32> to vector<8x128xf32>
    %c0_73 = arith.constant 0 : index
    %c0_74 = arith.constant 0 : index
    %191 = vector.load %arg5[%c0_73, %c0_74] : memref<32x128xf32, #tpu.memory_space<vmem>>, vector<32x128xf32>
    %cst_75 = arith.constant dense<0.000000e+00> : vector<8x128xf32>
    %192 = tpu.matmul %183, %191, %cst_75 {dimension_numbers = #tpu.dot_dimension_numbers<[1], [0], [0], [1], [0, 0, 1, 1], [], []>} : vector<8x32xf32>, vector<32x128xf32>, vector<8x128xf32> -> vector<8x128xf32>
    %193 = arith.addf %190, %192 : vector<8x128xf32>
    %194 = arith.negf %193 : vector<8x128xf32>
    %195 = math.exp %194 : vector<8x128xf32>
    %cst_76 = arith.constant 1.000000e+00 : f32
    %196 = vector.broadcast %cst_76 : f32 to vector<8x128xf32>
    %197 = arith.addf %196, %195 : vector<8x128xf32>
    %198 = arith.divf %196, %197 : vector<8x128xf32>
    %199 = math.tanh %193 : vector<8x128xf32>
    %200 = vector.extract_strided_slice %198 {offsets = [0, 0], sizes = [8, 32], strides = [1, 1]} : vector<8x128xf32> to vector<8x32xf32>
    %201 = vector.extract_strided_slice %198 {offsets = [0, 32], sizes = [8, 32], strides = [1, 1]} : vector<8x128xf32> to vector<8x32xf32>
    %202 = vector.extract_strided_slice %199 {offsets = [0, 64], sizes = [8, 32], strides = [1, 1]} : vector<8x128xf32> to vector<8x32xf32>
    %203 = vector.extract_strided_slice %198 {offsets = [0, 96], sizes = [8, 32], strides = [1, 1]} : vector<8x128xf32> to vector<8x32xf32>
    %204 = arith.mulf %201, %181 : vector<8x32xf32>
    %205 = arith.mulf %200, %202 : vector<8x32xf32>
    %206 = arith.addf %204, %205 : vector<8x32xf32>
    %207 = math.tanh %206 : vector<8x32xf32>
    %208 = arith.mulf %203, %207 : vector<8x32xf32>
    %209 = arith.index_cast %c7_i32 : i32 to index
    %c0_77 = arith.constant 0 : index
    %c0_78 = arith.constant 0 : index
    %210 = vector.load %arg14[%209, %c0_77, %c0_78] : memref<8x8x32xf32, #tpu.memory_space<vmem>>, vector<1x8x32xf32>
    %211 = vector.shape_cast %210 : vector<1x8x32xf32> to vector<8x32xf32>
    %212 = vector.shape_cast %208 : vector<8x32xf32> to vector<1x8x32xf32>
    tpu.vector_store %arg14[%209, %c0_77, %c0_78], %212 {strides = array<i32>} : memref<8x8x32xf32, #tpu.memory_space<vmem>>, vector<1x8x32xf32>,
    %c8_i32 = arith.constant 8 : i32
    %c0_79 = arith.constant 0 : index
    %c0_80 = arith.constant 0 : index
    %c0_81 = arith.constant 0 : index
    %213 = vector.load %arg12[%c0_79, %c0_80, %c0_81] : memref<2x8x32xf32, #tpu.memory_space<vmem>>, vector<1x8x32xf32>
    %214 = vector.shape_cast %213 : vector<1x8x32xf32> to vector<8x32xf32>
    %215 = vector.shape_cast %208 : vector<8x32xf32> to vector<1x8x32xf32>
    tpu.vector_store %arg12[%c0_79, %c0_80, %c0_81], %215 {strides = array<i32>} : memref<2x8x32xf32, #tpu.memory_space<vmem>>, vector<1x8x32xf32>,
    %c0_82 = arith.constant 0 : index
    %c0_83 = arith.constant 0 : index
    %c0_84 = arith.constant 0 : index
    %216 = vector.load %arg13[%c0_82, %c0_83, %c0_84] : memref<2x8x32xf32, #tpu.memory_space<vmem>>, vector<1x8x32xf32>
    %217 = vector.shape_cast %216 : vector<1x8x32xf32> to vector<8x32xf32>
    %218 = vector.shape_cast %206 : vector<8x32xf32> to vector<1x8x32xf32>
    tpu.vector_store %arg13[%c0_82, %c0_83, %c0_84], %218 {strides = array<i32>} : memref<2x8x32xf32, #tpu.memory_space<vmem>>, vector<1x8x32xf32>,
    %c0_85 = arith.constant 0 : index
    %c0_86 = arith.constant 0 : index
    %c0_87 = arith.constant 0 : index
    %219 = vector.load %arg14[%c0_85, %c0_86, %c0_87] : memref<8x8x32xf32, #tpu.memory_space<vmem>>, vector<8x8x32xf32>
    %220 = vector.shape_cast %219 : vector<8x8x32xf32> to vector<64x32xf32>
    %c0_88 = arith.constant 0 : index
    %c0_89 = arith.constant 0 : index
    %221 = vector.load %arg4[%c0_88, %c0_89] : memref<32x128xf32, #tpu.memory_space<vmem>>, vector<32x128xf32>
    %cst_90 = arith.constant dense<0.000000e+00> : vector<64x128xf32>
    %222 = tpu.matmul %220, %221, %cst_90 {dimension_numbers = #tpu.dot_dimension_numbers<[1], [0], [0], [1], [0, 0, 1, 1], [], []>} : vector<64x32xf32>, vector<32x128xf32>, vector<64x128xf32> -> vector<64x128xf32>
    %c0_91 = arith.constant 0 : index
    %c0_92 = arith.constant 0 : index
    %223 = vector.load %arg8[%c0_91, %c0_92] : memref<1x128xf32, #tpu.memory_space<vmem>>, vector<1x128xf32>
    %224 = vector.broadcast %223 : vector<1x128xf32> to vector<64x128xf32>
    %225 = arith.addf %222, %224 : vector<64x128xf32>
    %226 = vector.shape_cast %225 : vector<64x128xf32> to vector<8x8x128xf32>
    %c0_93 = arith.constant 0 : index
    %c0_94 = arith.constant 0 : index
    %c0_95 = arith.constant 0 : index
    %227 = vector.load %arg15[%c0_93, %c0_94, %c0_95] : memref<8x8x128xf32, #tpu.memory_space<vmem>>, vector<8x8x128xf32>
    tpu.vector_store %arg15[%c0_93, %c0_94, %c0_95], %226 {strides = array<i32>} : memref<8x8x128xf32, #tpu.memory_space<vmem>>, vector<8x8x128xf32>,
    %c1 = arith.constant 1 : index
    %c0_96 = arith.constant 0 : index
    %c0_97 = arith.constant 0 : index
    %228 = vector.load %arg1[%c1, %c0_96, %c0_97] : memref<2x8x32xf32, #tpu.memory_space<vmem>>, vector<1x8x32xf32>
    %229 = vector.shape_cast %228 : vector<1x8x32xf32> to vector<8x32xf32>
    %c1_98 = arith.constant 1 : index
    %c0_99 = arith.constant 0 : index
    %c0_100 = arith.constant 0 : index
    %230 = vector.load %arg2[%c1_98, %c0_99, %c0_100] : memref<2x8x32xf32, #tpu.memory_space<vmem>>, vector<1x8x32xf32>
    %231 = vector.shape_cast %230 : vector<1x8x32xf32> to vector<8x32xf32>
    %c0_i32_101 = arith.constant 0 : i32
    %232 = arith.index_cast %c0_i32_101 : i32 to index
    %c0_102 = arith.constant 0 : index
    %c0_103 = arith.constant 0 : index
    %233 = vector.load %arg15[%232, %c0_102, %c0_103] : memref<8x8x128xf32, #tpu.memory_space<vmem>>, vector<1x8x128xf32>
    %234 = vector.shape_cast %233 : vector<1x8x128xf32> to vector<8x128xf32>
    %c0_104 = arith.constant 0 : index
    %c0_105 = arith.constant 0 : index
    %235 = vector.load %arg6[%c0_104, %c0_105] : memref<32x128xf32, #tpu.memory_space<vmem>>, vector<32x128xf32>
    %cst_106 = arith.constant dense<0.000000e+00> : vector<8x128xf32>
    %236 = tpu.matmul %229, %235, %cst_106 {dimension_numbers = #tpu.dot_dimension_numbers<[1], [0], [0], [1], [0, 0, 1, 1], [], []>} : vector<8x32xf32>, vector<32x128xf32>, vector<8x128xf32> -> vector<8x128xf32>
    %237 = arith.addf %234, %236 : vector<8x128xf32>
    %238 = arith.negf %237 : vector<8x128xf32>
    %239 = math.exp %238 : vector<8x128xf32>
    %cst_107 = arith.constant 1.000000e+00 : f32
    %240 = vector.broadcast %cst_107 : f32 to vector<8x128xf32>
    %241 = arith.addf %240, %239 : vector<8x128xf32>
    %242 = arith.divf %240, %241 : vector<8x128xf32>
    %243 = math.tanh %237 : vector<8x128xf32>
    %244 = vector.extract_strided_slice %242 {offsets = [0, 0], sizes = [8, 32], strides = [1, 1]} : vector<8x128xf32> to vector<8x32xf32>
    %245 = vector.extract_strided_slice %242 {offsets = [0, 32], sizes = [8, 32], strides = [1, 1]} : vector<8x128xf32> to vector<8x32xf32>
    %246 = vector.extract_strided_slice %243 {offsets = [0, 64], sizes = [8, 32], strides = [1, 1]} : vector<8x128xf32> to vector<8x32xf32>
    %247 = vector.extract_strided_slice %242 {offsets = [0, 96], sizes = [8, 32], strides = [1, 1]} : vector<8x128xf32> to vector<8x32xf32>
    %248 = arith.mulf %245, %231 : vector<8x32xf32>
    %249 = arith.mulf %244, %246 : vector<8x32xf32>
    %250 = arith.addf %248, %249 : vector<8x32xf32>
    %251 = math.tanh %250 : vector<8x32xf32>
    %252 = arith.mulf %247, %251 : vector<8x32xf32>
    %c1_i32_108 = arith.constant 1 : i32
    %253 = arith.index_cast %c1_i32_108 : i32 to index
    %c0_109 = arith.constant 0 : index
    %c0_110 = arith.constant 0 : index
    %254 = vector.load %arg15[%253, %c0_109, %c0_110] : memref<8x8x128xf32, #tpu.memory_space<vmem>>, vector<1x8x128xf32>
    %255 = vector.shape_cast %254 : vector<1x8x128xf32> to vector<8x128xf32>
    %c0_111 = arith.constant 0 : index
    %c0_112 = arith.constant 0 : index
    %256 = vector.load %arg6[%c0_111, %c0_112] : memref<32x128xf32, #tpu.memory_space<vmem>>, vector<32x128xf32>
    %cst_113 = arith.constant dense<0.000000e+00> : vector<8x128xf32>
    %257 = tpu.matmul %252, %256, %cst_113 {dimension_numbers = #tpu.dot_dimension_numbers<[1], [0], [0], [1], [0, 0, 1, 1], [], []>} : vector<8x32xf32>, vector<32x128xf32>, vector<8x128xf32> -> vector<8x128xf32>
    %258 = arith.addf %255, %257 : vector<8x128xf32>
    %259 = arith.negf %258 : vector<8x128xf32>
    %260 = math.exp %259 : vector<8x128xf32>
    %cst_114 = arith.constant 1.000000e+00 : f32
    %261 = vector.broadcast %cst_114 : f32 to vector<8x128xf32>
    %262 = arith.addf %261, %260 : vector<8x128xf32>
    %263 = arith.divf %261, %262 : vector<8x128xf32>
    %264 = math.tanh %258 : vector<8x128xf32>
    %265 = vector.extract_strided_slice %263 {offsets = [0, 0], sizes = [8, 32], strides = [1, 1]} : vector<8x128xf32> to vector<8x32xf32>
    %266 = vector.extract_strided_slice %263 {offsets = [0, 32], sizes = [8, 32], strides = [1, 1]} : vector<8x128xf32> to vector<8x32xf32>
    %267 = vector.extract_strided_slice %264 {offsets = [0, 64], sizes = [8, 32], strides = [1, 1]} : vector<8x128xf32> to vector<8x32xf32>
    %268 = vector.extract_strided_slice %263 {offsets = [0, 96], sizes = [8, 32], strides = [1, 1]} : vector<8x128xf32> to vector<8x32xf32>
    %269 = arith.mulf %266, %250 : vector<8x32xf32>
    %270 = arith.mulf %265, %267 : vector<8x32xf32>
    %271 = arith.addf %269, %270 : vector<8x32xf32>
    %272 = math.tanh %271 : vector<8x32xf32>
    %273 = arith.mulf %268, %272 : vector<8x32xf32>
    %c2_i32_115 = arith.constant 2 : i32
    %274 = arith.index_cast %c2_i32_115 : i32 to index
    %c0_116 = arith.constant 0 : index
    %c0_117 = arith.constant 0 : index
    %275 = vector.load %arg15[%274, %c0_116, %c0_117] : memref<8x8x128xf32, #tpu.memory_space<vmem>>, vector<1x8x128xf32>
    %276 = vector.shape_cast %275 : vector<1x8x128xf32> to vector<8x128xf32>
    %c0_118 = arith.constant 0 : index
    %c0_119 = arith.constant 0 : index
    %277 = vector.load %arg6[%c0_118, %c0_119] : memref<32x128xf32, #tpu.memory_space<vmem>>, vector<32x128xf32>
    %cst_120 = arith.constant dense<0.000000e+00> : vector<8x128xf32>
    %278 = tpu.matmul %273, %277, %cst_120 {dimension_numbers = #tpu.dot_dimension_numbers<[1], [0], [0], [1], [0, 0, 1, 1], [], []>} : vector<8x32xf32>, vector<32x128xf32>, vector<8x128xf32> -> vector<8x128xf32>
    %279 = arith.addf %276, %278 : vector<8x128xf32>
    %280 = arith.negf %279 : vector<8x128xf32>
    %281 = math.exp %280 : vector<8x128xf32>
    %cst_121 = arith.constant 1.000000e+00 : f32
    %282 = vector.broadcast %cst_121 : f32 to vector<8x128xf32>
    %283 = arith.addf %282, %281 : vector<8x128xf32>
    %284 = arith.divf %282, %283 : vector<8x128xf32>
    %285 = math.tanh %279 : vector<8x128xf32>
    %286 = vector.extract_strided_slice %284 {offsets = [0, 0], sizes = [8, 32], strides = [1, 1]} : vector<8x128xf32> to vector<8x32xf32>
    %287 = vector.extract_strided_slice %284 {offsets = [0, 32], sizes = [8, 32], strides = [1, 1]} : vector<8x128xf32> to vector<8x32xf32>
    %288 = vector.extract_strided_slice %285 {offsets = [0, 64], sizes = [8, 32], strides = [1, 1]} : vector<8x128xf32> to vector<8x32xf32>
    %289 = vector.extract_strided_slice %284 {offsets = [0, 96], sizes = [8, 32], strides = [1, 1]} : vector<8x128xf32> to vector<8x32xf32>
    %290 = arith.mulf %287, %271 : vector<8x32xf32>
    %291 = arith.mulf %286, %288 : vector<8x32xf32>
    %292 = arith.addf %290, %291 : vector<8x32xf32>
    %293 = math.tanh %292 : vector<8x32xf32>
    %294 = arith.mulf %289, %293 : vector<8x32xf32>
    %c3_i32_122 = arith.constant 3 : i32
    %295 = arith.index_cast %c3_i32_122 : i32 to index
    %c0_123 = arith.constant 0 : index
    %c0_124 = arith.constant 0 : index
    %296 = vector.load %arg15[%295, %c0_123, %c0_124] : memref<8x8x128xf32, #tpu.memory_space<vmem>>, vector<1x8x128xf32>
    %297 = vector.shape_cast %296 : vector<1x8x128xf32> to vector<8x128xf32>
    %c0_125 = arith.constant 0 : index
    %c0_126 = arith.constant 0 : index
    %298 = vector.load %arg6[%c0_125, %c0_126] : memref<32x128xf32, #tpu.memory_space<vmem>>, vector<32x128xf32>
    %cst_127 = arith.constant dense<0.000000e+00> : vector<8x128xf32>
    %299 = tpu.matmul %294, %298, %cst_127 {dimension_numbers = #tpu.dot_dimension_numbers<[1], [0], [0], [1], [0, 0, 1, 1], [], []>} : vector<8x32xf32>, vector<32x128xf32>, vector<8x128xf32> -> vector<8x128xf32>
    %300 = arith.addf %297, %299 : vector<8x128xf32>
    %301 = arith.negf %300 : vector<8x128xf32>
    %302 = math.exp %301 : vector<8x128xf32>
    %cst_128 = arith.constant 1.000000e+00 : f32
    %303 = vector.broadcast %cst_128 : f32 to vector<8x128xf32>
    %304 = arith.addf %303, %302 : vector<8x128xf32>
    %305 = arith.divf %303, %304 : vector<8x128xf32>
    %306 = math.tanh %300 : vector<8x128xf32>
    %307 = vector.extract_strided_slice %305 {offsets = [0, 0], sizes = [8, 32], strides = [1, 1]} : vector<8x128xf32> to vector<8x32xf32>
    %308 = vector.extract_strided_slice %305 {offsets = [0, 32], sizes = [8, 32], strides = [1, 1]} : vector<8x128xf32> to vector<8x32xf32>
    %309 = vector.extract_strided_slice %306 {offsets = [0, 64], sizes = [8, 32], strides = [1, 1]} : vector<8x128xf32> to vector<8x32xf32>
    %310 = vector.extract_strided_slice %305 {offsets = [0, 96], sizes = [8, 32], strides = [1, 1]} : vector<8x128xf32> to vector<8x32xf32>
    %311 = arith.mulf %308, %292 : vector<8x32xf32>
    %312 = arith.mulf %307, %309 : vector<8x32xf32>
    %313 = arith.addf %311, %312 : vector<8x32xf32>
    %314 = math.tanh %313 : vector<8x32xf32>
    %315 = arith.mulf %310, %314 : vector<8x32xf32>
    %c4_i32_129 = arith.constant 4 : i32
    %316 = arith.index_cast %c4_i32_129 : i32 to index
    %c0_130 = arith.constant 0 : index
    %c0_131 = arith.constant 0 : index
    %317 = vector.load %arg15[%316, %c0_130, %c0_131] : memref<8x8x128xf32, #tpu.memory_space<vmem>>, vector<1x8x128xf32>
    %318 = vector.shape_cast %317 : vector<1x8x128xf32> to vector<8x128xf32>
    %c0_132 = arith.constant 0 : index
    %c0_133 = arith.constant 0 : index
    %319 = vector.load %arg6[%c0_132, %c0_133] : memref<32x128xf32, #tpu.memory_space<vmem>>, vector<32x128xf32>
    %cst_134 = arith.constant dense<0.000000e+00> : vector<8x128xf32>
    %320 = tpu.matmul %315, %319, %cst_134 {dimension_numbers = #tpu.dot_dimension_numbers<[1], [0], [0], [1], [0, 0, 1, 1], [], []>} : vector<8x32xf32>, vector<32x128xf32>, vector<8x128xf32> -> vector<8x128xf32>
    %321 = arith.addf %318, %320 : vector<8x128xf32>
    %322 = arith.negf %321 : vector<8x128xf32>
    %323 = math.exp %322 : vector<8x128xf32>
    %cst_135 = arith.constant 1.000000e+00 : f32
    %324 = vector.broadcast %cst_135 : f32 to vector<8x128xf32>
    %325 = arith.addf %324, %323 : vector<8x128xf32>
    %326 = arith.divf %324, %325 : vector<8x128xf32>
    %327 = math.tanh %321 : vector<8x128xf32>
    %328 = vector.extract_strided_slice %326 {offsets = [0, 0], sizes = [8, 32], strides = [1, 1]} : vector<8x128xf32> to vector<8x32xf32>
    %329 = vector.extract_strided_slice %326 {offsets = [0, 32], sizes = [8, 32], strides = [1, 1]} : vector<8x128xf32> to vector<8x32xf32>
    %330 = vector.extract_strided_slice %327 {offsets = [0, 64], sizes = [8, 32], strides = [1, 1]} : vector<8x128xf32> to vector<8x32xf32>
    %331 = vector.extract_strided_slice %326 {offsets = [0, 96], sizes = [8, 32], strides = [1, 1]} : vector<8x128xf32> to vector<8x32xf32>
    %332 = arith.mulf %329, %313 : vector<8x32xf32>
    %333 = arith.mulf %328, %330 : vector<8x32xf32>
    %334 = arith.addf %332, %333 : vector<8x32xf32>
    %335 = math.tanh %334 : vector<8x32xf32>
    %336 = arith.mulf %331, %335 : vector<8x32xf32>
    %c5_i32_136 = arith.constant 5 : i32
    %337 = arith.index_cast %c5_i32_136 : i32 to index
    %c0_137 = arith.constant 0 : index
    %c0_138 = arith.constant 0 : index
    %338 = vector.load %arg15[%337, %c0_137, %c0_138] : memref<8x8x128xf32, #tpu.memory_space<vmem>>, vector<1x8x128xf32>
    %339 = vector.shape_cast %338 : vector<1x8x128xf32> to vector<8x128xf32>
    %c0_139 = arith.constant 0 : index
    %c0_140 = arith.constant 0 : index
    %340 = vector.load %arg6[%c0_139, %c0_140] : memref<32x128xf32, #tpu.memory_space<vmem>>, vector<32x128xf32>
    %cst_141 = arith.constant dense<0.000000e+00> : vector<8x128xf32>
    %341 = tpu.matmul %336, %340, %cst_141 {dimension_numbers = #tpu.dot_dimension_numbers<[1], [0], [0], [1], [0, 0, 1, 1], [], []>} : vector<8x32xf32>, vector<32x128xf32>, vector<8x128xf32> -> vector<8x128xf32>
    %342 = arith.addf %339, %341 : vector<8x128xf32>
    %343 = arith.negf %342 : vector<8x128xf32>
    %344 = math.exp %343 : vector<8x128xf32>
    %cst_142 = arith.constant 1.000000e+00 : f32
    %345 = vector.broadcast %cst_142 : f32 to vector<8x128xf32>
    %346 = arith.addf %345, %344 : vector<8x128xf32>
    %347 = arith.divf %345, %346 : vector<8x128xf32>
    %348 = math.tanh %342 : vector<8x128xf32>
    %349 = vector.extract_strided_slice %347 {offsets = [0, 0], sizes = [8, 32], strides = [1, 1]} : vector<8x128xf32> to vector<8x32xf32>
    %350 = vector.extract_strided_slice %347 {offsets = [0, 32], sizes = [8, 32], strides = [1, 1]} : vector<8x128xf32> to vector<8x32xf32>
    %351 = vector.extract_strided_slice %348 {offsets = [0, 64], sizes = [8, 32], strides = [1, 1]} : vector<8x128xf32> to vector<8x32xf32>
    %352 = vector.extract_strided_slice %347 {offsets = [0, 96], sizes = [8, 32], strides = [1, 1]} : vector<8x128xf32> to vector<8x32xf32>
    %353 = arith.mulf %350, %334 : vector<8x32xf32>
    %354 = arith.mulf %349, %351 : vector<8x32xf32>
    %355 = arith.addf %353, %354 : vector<8x32xf32>
    %356 = math.tanh %355 : vector<8x32xf32>
    %357 = arith.mulf %352, %356 : vector<8x32xf32>
    %c6_i32_143 = arith.constant 6 : i32
    %358 = arith.index_cast %c6_i32_143 : i32 to index
    %c0_144 = arith.constant 0 : index
    %c0_145 = arith.constant 0 : index
    %359 = vector.load %arg15[%358, %c0_144, %c0_145] : memref<8x8x128xf32, #tpu.memory_space<vmem>>, vector<1x8x128xf32>
    %360 = vector.shape_cast %359 : vector<1x8x128xf32> to vector<8x128xf32>
    %c0_146 = arith.constant 0 : index
    %c0_147 = arith.constant 0 : index
    %361 = vector.load %arg6[%c0_146, %c0_147] : memref<32x128xf32, #tpu.memory_space<vmem>>, vector<32x128xf32>
    %cst_148 = arith.constant dense<0.000000e+00> : vector<8x128xf32>
    %362 = tpu.matmul %357, %361, %cst_148 {dimension_numbers = #tpu.dot_dimension_numbers<[1], [0], [0], [1], [0, 0, 1, 1], [], []>} : vector<8x32xf32>, vector<32x128xf32>, vector<8x128xf32> -> vector<8x128xf32>
    %363 = arith.addf %360, %362 : vector<8x128xf32>
    %364 = arith.negf %363 : vector<8x128xf32>
    %365 = math.exp %364 : vector<8x128xf32>
    %cst_149 = arith.constant 1.000000e+00 : f32
    %366 = vector.broadcast %cst_149 : f32 to vector<8x128xf32>
    %367 = arith.addf %366, %365 : vector<8x128xf32>
    %368 = arith.divf %366, %367 : vector<8x128xf32>
    %369 = math.tanh %363 : vector<8x128xf32>
    %370 = vector.extract_strided_slice %368 {offsets = [0, 0], sizes = [8, 32], strides = [1, 1]} : vector<8x128xf32> to vector<8x32xf32>
    %371 = vector.extract_strided_slice %368 {offsets = [0, 32], sizes = [8, 32], strides = [1, 1]} : vector<8x128xf32> to vector<8x32xf32>
    %372 = vector.extract_strided_slice %369 {offsets = [0, 64], sizes = [8, 32], strides = [1, 1]} : vector<8x128xf32> to vector<8x32xf32>
    %373 = vector.extract_strided_slice %368 {offsets = [0, 96], sizes = [8, 32], strides = [1, 1]} : vector<8x128xf32> to vector<8x32xf32>
    %374 = arith.mulf %371, %355 : vector<8x32xf32>
    %375 = arith.mulf %370, %372 : vector<8x32xf32>
    %376 = arith.addf %374, %375 : vector<8x32xf32>
    %377 = math.tanh %376 : vector<8x32xf32>
    %378 = arith.mulf %373, %377 : vector<8x32xf32>
    %c7_i32_150 = arith.constant 7 : i32
    %379 = arith.index_cast %c7_i32_150 : i32 to index
    %c0_151 = arith.constant 0 : index
    %c0_152 = arith.constant 0 : index
    %380 = vector.load %arg15[%379, %c0_151, %c0_152] : memref<8x8x128xf32, #tpu.memory_space<vmem>>, vector<1x8x128xf32>
    %381 = vector.shape_cast %380 : vector<1x8x128xf32> to vector<8x128xf32>
    %c0_153 = arith.constant 0 : index
    %c0_154 = arith.constant 0 : index
    %382 = vector.load %arg6[%c0_153, %c0_154] : memref<32x128xf32, #tpu.memory_space<vmem>>, vector<32x128xf32>
    %cst_155 = arith.constant dense<0.000000e+00> : vector<8x128xf32>
    %383 = tpu.matmul %378, %382, %cst_155 {dimension_numbers = #tpu.dot_dimension_numbers<[1], [0], [0], [1], [0, 0, 1, 1], [], []>} : vector<8x32xf32>, vector<32x128xf32>, vector<8x128xf32> -> vector<8x128xf32>
    %384 = arith.addf %381, %383 : vector<8x128xf32>
    %385 = arith.negf %384 : vector<8x128xf32>
    %386 = math.exp %385 : vector<8x128xf32>
    %cst_156 = arith.constant 1.000000e+00 : f32
    %387 = vector.broadcast %cst_156 : f32 to vector<8x128xf32>
    %388 = arith.addf %387, %386 : vector<8x128xf32>
    %389 = arith.divf %387, %388 : vector<8x128xf32>
    %390 = math.tanh %384 : vector<8x128xf32>
    %391 = vector.extract_strided_slice %389 {offsets = [0, 0], sizes = [8, 32], strides = [1, 1]} : vector<8x128xf32> to vector<8x32xf32>
    %392 = vector.extract_strided_slice %389 {offsets = [0, 32], sizes = [8, 32], strides = [1, 1]} : vector<8x128xf32> to vector<8x32xf32>
    %393 = vector.extract_strided_slice %390 {offsets = [0, 64], sizes = [8, 32], strides = [1, 1]} : vector<8x128xf32> to vector<8x32xf32>
    %394 = vector.extract_strided_slice %389 {offsets = [0, 96], sizes = [8, 32], strides = [1, 1]} : vector<8x128xf32> to vector<8x32xf32>
    %395 = arith.mulf %392, %376 : vector<8x32xf32>
    %396 = arith.mulf %391, %393 : vector<8x32xf32>
    %397 = arith.addf %395, %396 : vector<8x32xf32>
    %398 = math.tanh %397 : vector<8x32xf32>
    %399 = arith.mulf %394, %398 : vector<8x32xf32>
    %c8_i32_157 = arith.constant 8 : i32
    %c1_158 = arith.constant 1 : index
    %c0_159 = arith.constant 0 : index
    %c0_160 = arith.constant 0 : index
    %400 = vector.load %arg12[%c1_158, %c0_159, %c0_160] : memref<2x8x32xf32, #tpu.memory_space<vmem>>, vector<1x8x32xf32>
    %401 = vector.shape_cast %400 : vector<1x8x32xf32> to vector<8x32xf32>
    %402 = vector.shape_cast %399 : vector<8x32xf32> to vector<1x8x32xf32>
    tpu.vector_store %arg12[%c1_158, %c0_159, %c0_160], %402 {strides = array<i32>} : memref<2x8x32xf32, #tpu.memory_space<vmem>>, vector<1x8x32xf32>,
    %c1_161 = arith.constant 1 : index
    %c0_162 = arith.constant 0 : index
    %c0_163 = arith.constant 0 : index
    %403 = vector.load %arg13[%c1_161, %c0_162, %c0_163] : memref<2x8x32xf32, #tpu.memory_space<vmem>>, vector<1x8x32xf32>
    %404 = vector.shape_cast %403 : vector<1x8x32xf32> to vector<8x32xf32>
    %405 = vector.shape_cast %397 : vector<8x32xf32> to vector<1x8x32xf32>
    tpu.vector_store %arg13[%c1_161, %c0_162, %c0_163], %405 {strides = array<i32>} : memref<2x8x32xf32, #tpu.memory_space<vmem>>, vector<1x8x32xf32>,
    %c0_164 = arith.constant 0 : index
    %c0_165 = arith.constant 0 : index
    %406 = vector.load %arg9[%c0_164, %c0_165] : memref<1x32xf32, #tpu.memory_space<vmem>>, vector<1x32xf32>
    %407 = vector.broadcast %406 : vector<1x32xf32> to vector<8x32xf32>
    %408 = arith.mulf %399, %407 : vector<8x32xf32>
    %cst_166 = arith.constant dense<0.000000e+00> : vector<8xf32>
    %409 = vector.multi_reduction <add>, %408, %cst_166 [1] : vector<8x32xf32> to vector<8xf32>
    %410 = vector.shape_cast %409 : vector<8xf32> to vector<8x1xf32>
    %c0_167 = arith.constant 0 : index
    %c0_168 = arith.constant 0 : index
    %411 = vector.load %arg10[%c0_167, %c0_168] : memref<1x1xf32, #tpu.memory_space<vmem>>, vector<1x1xf32>
    %412 = vector.broadcast %411 : vector<1x1xf32> to vector<8x1xf32>
    %413 = arith.addf %410, %412 : vector<8x1xf32>
    %c0_169 = arith.constant 0 : index
    %c0_170 = arith.constant 0 : index
    %414 = vector.load %arg11[%c0_169, %c0_170] : memref<8x1xf32, #tpu.memory_space<vmem>>, vector<8x1xf32>
    tpu.vector_store %arg11[%c0_169, %c0_170], %413 {strides = array<i32>} : memref<8x1xf32, #tpu.memory_space<vmem>>, vector<8x1xf32>,
    return
  }
}

</mosaic_0001>

<llo_original>
// kernel: tpu_custom_call.1
$region0: #{tpu_custom_call.1}
  #allocation0 [shape = 'u32[]', space=smem, size = 0x4, offset = 0x4, fixed_abs, tag = 'smem constant byte address 0x4 - core index']
  #allocation1 [shape = 'u32[144,128]{1,0:T(1,128)}', space=vmem, size = 0x12000, scoped, tag = 'internal scratch']
  #allocation2 [shape = 'f32[8,8,32]{2,1,0:T(8,128)}', space=vmem, size = 0x8000, scoped, tag = 'scratch operand']
  #allocation3 [shape = 'f32[8,8,128]{2,1,0:T(8,128)}', space=vmem, size = 0x8000, scoped, tag = 'scratch operand']
  #allocation4 [shape = 'f32[1,1]{1,0:T(1,128)S(1)}', space=vmem, size = 0x200, scoped, tag = 'scoped memory for tpu_custom_call.1']
  %s0 = inlined_call_operand.hbm [shape: f32[8,8,8], index: 0, kind: input, shape index: {}]
  %s1 = inlined_call_operand.hbm [shape: f32[2,8,32], index: 1, kind: input, shape index: {}]
  %s2 = inlined_call_operand.hbm [shape: f32[2,8,32], index: 2, kind: input, shape index: {}]
  %s3 = inlined_call_operand.hbm [shape: f32[8,128], index: 3, kind: input, shape index: {}]
  %s4 = inlined_call_operand.hbm [shape: f32[32,128], index: 4, kind: input, shape index: {}]
  %s5 = inlined_call_operand.hbm [shape: f32[32,128], index: 5, kind: input, shape index: {}]
  %s6 = inlined_call_operand.hbm [shape: f32[32,128], index: 6, kind: input, shape index: {}]
  %s7 = inlined_call_operand.hbm [shape: f32[1,128], index: 7, kind: input, shape index: {}]
  %s8 = inlined_call_operand.hbm [shape: f32[1,128], index: 8, kind: input, shape index: {}]
  %s9 = inlined_call_operand.hbm [shape: f32[1,32], index: 9, kind: input, shape index: {}]
  %s10 = inlined_call_operand.<no memory space> [shape: f32[1,1], index: 10, kind: input, shape index: {}]
  %s11 = inlined_call_operand.hbm [shape: f32[8,1], index: 11, kind: output, shape index: {0}]
  %s12 = inlined_call_operand.hbm [shape: f32[2,8,32], index: 12, kind: output, shape index: {1}]
  %s13 = inlined_call_operand.hbm [shape: f32[2,8,32], index: 13, kind: output, shape index: {2}]
  %14 = xla_tuple %s11, %s12, %s13
  %s15 = sld [smem:[#allocation0]]
  $region110: #{tpu_custom_call.1} parent=0
    _
  %s17 = ssub.s32 1, %s15
  %s18 = scalar_select 0, %s17, %s15
  %v19 = vstv %s10
  %20 = vst [vmem:[#allocation4] sm:$0x1] %v19
  $region1: #{tpu_custom_call.1} parent=0
    #allocation5 [shape = 'u8[32768]{0}', space=vmem, size = 0x8000, scoped, tag = 'input window, operand 0, single buffered']
    #allocation6 [shape = 's32[1]{0}', space=sflag, size = 0x4, scoped, tag = 'scoped memory for tpu_custom_call.1']
    #allocation7 [shape = 's32[1]{0}', space=sflag, size = 0x4, scoped, tag = 'scoped memory for tpu_custom_call.1']
    #allocation8 [shape = 'u8[8192]{0}', space=vmem, size = 0x2000, scoped, tag = 'input window, operand 1, single buffered']
    #allocation9 [shape = 's32[1]{0}', space=sflag, size = 0x4, scoped, tag = 'scoped memory for tpu_custom_call.1']
    #allocation10 [shape = 'u8[8192]{0}', space=vmem, size = 0x2000, scoped, tag = 'input window, operand 2, single buffered']
    #allocation11 [shape = 'u8[4096]{0}', space=vmem, size = 0x1000, scoped, tag = 'input window, operand 3, single buffered']
    #allocation12 [shape = 's32[1]{0}', space=sflag, size = 0x4, scoped, tag = 'scoped memory for tpu_custom_call.1']
    #allocation13 [shape = 'u8[16384]{0}', space=vmem, size = 0x4000, scoped, tag = 'input window, operand 4, single buffered']
    #allocation14 [shape = 'u8[16384]{0}', space=vmem, size = 0x4000, scoped, tag = 'input window, operand 5, single buffered']
    #allocation15 [shape = 's32[1]{0}', space=sflag, size = 0x4, scoped, tag = 'scoped memory for tpu_custom_call.1']
    #allocation16 [shape = 'u8[16384]{0}', space=vmem, size = 0x4000, scoped, tag = 'input window, operand 6, single buffered']
    #allocation17 [shape = 'u8[512]{0}', space=vmem, size = 0x400, scoped, tag = 'input window, operand 7, single buffered']
    #allocation18 [shape = 's32[1]{0}', space=sflag, size = 0x4, scoped, tag = 'scoped memory for tpu_custom_call.1']
    #allocation19 [shape = 'u8[512]{0}', space=vmem, size = 0x400, scoped, tag = 'input window, operand 8, single buffered']
    #allocation20 [shape = 'u8[512]{0}', space=vmem, size = 0x400, scoped, tag = 'input window, operand 9, single buffered']
    #allocation21 [shape = 's32[1]{0}', space=sflag, size = 0x4, scoped, tag = 'scoped memory for tpu_custom_call.1']
    #allocation22 [shape = 'u8[4096]{0}', space=vmem, size = 0x1000, scoped, tag = 'output window, operand 0, single buffered']
    #allocation23 [shape = 'u8[8192]{0}', space=vmem, size = 0x2000, scoped, tag = 'output window, operand 1, single buffered']
    #allocation24 [shape = 's32[1]{0}', space=sflag, size = 0x4, scoped, tag = 'scoped memory for tpu_custom_call.1']
    #allocation25 [shape = 'u8[8192]{0}', space=vmem, size = 0x2000, scoped, tag = 'output window, operand 2, single buffered']
    %21 = vsyncpa [#allocation6], 0
    %22 = vsyncpa [#allocation9], 0
    %23 = vsyncpa [#allocation12], 0
    %24 = vsyncpa [#allocation15], 0
    %25 = vsyncpa [#allocation18], 0
    %26 = vsyncpa [#allocation21], 0
    %27 = vsyncpa [#allocation7], 0
    %28 = vsyncpa [#allocation24], 0
    // Predicated region
    $region2: #{tpu_custom_call.1} parent=1 // pred_check
      _
    $region3: #{tpu_custom_call.1} parent=1 // pred_check_branch
      %30 = sbr.rel (0) target = $region5
    $region4: #{tpu_custom_call.1} parent=1 // pred_region
      %s32 = ssub.s32 1024, 1024
      %33 = vsyncadd [#allocation6], %s32
      %s34 = sshll.u32 [#allocation5], 4
      %s35 = int_to_ptr.vmem [resolvable:$true] %s34
      %40 = dma.hbm_to_vmem [thread:$0]  %s0, 1024, %s35, [#allocation6], 128, 128, 8
    $region5: #{tpu_custom_call.1} parent=1 // pred_fallthru
      _
    // Predicated region
    $region6: #{tpu_custom_call.1} parent=1 // pred_check
      _
    $region7: #{tpu_custom_call.1} parent=1 // pred_check_branch
      %42 = sbr.rel (0) target = $region9
    $region8: #{tpu_custom_call.1} parent=1 // pred_region
      %s44 = ssub.s32 256, 256
      %45 = vsyncadd [#allocation9], %s44
      %s46 = sshll.u32 [#allocation8], 4
      %s47 = int_to_ptr.vmem [resolvable:$true] %s46
      %52 = dma.hbm_to_vmem [thread:$0]  %s1, 256, %s47, [#allocation9], 128, 128, 8
    $region9: #{tpu_custom_call.1} parent=1 // pred_fallthru
      _
    // Predicated region
    $region10: #{tpu_custom_call.1} parent=1 // pred_check
      _
    $region11: #{tpu_custom_call.1} parent=1 // pred_check_branch
      %54 = sbr.rel (0) target = $region13
    $region12: #{tpu_custom_call.1} parent=1 // pred_region
      %s56 = ssub.s32 256, 256
      %57 = vsyncadd [#allocation9], %s56
      %s58 = sshll.u32 [#allocation10], 4
      %s59 = int_to_ptr.vmem [resolvable:$true] %s58
      %64 = dma.hbm_to_vmem [thread:$0]  %s2, 256, %s59, [#allocation9], 128, 128, 8
    $region13: #{tpu_custom_call.1} parent=1 // pred_fallthru
      _
    // Predicated region
    $region14: #{tpu_custom_call.1} parent=1 // pred_check
      _
    $region15: #{tpu_custom_call.1} parent=1 // pred_check_branch
      %66 = sbr.rel (0) target = $region17
    $region16: #{tpu_custom_call.1} parent=1 // pred_region
      %s68 = ssub.s32 128, 128
      %69 = vsyncadd [#allocation12], %s68
      %s71 = sshll.u32 [#allocation11], 4
      %s72 = int_to_ptr.vmem [resolvable:$true] %s71
      %74 = dma.hbm_to_vmem [thread:$0]  %s3, 128, %s72, [#allocation12]
    $region17: #{tpu_custom_call.1} parent=1 // pred_fallthru
      _
    // Predicated region
    $region18: #{tpu_custom_call.1} parent=1 // pred_check
      _
    $region19: #{tpu_custom_call.1} parent=1 // pred_check_branch
      %76 = sbr.rel (0) target = $region21
    $region20: #{tpu_custom_call.1} parent=1 // pred_region
      %s78 = ssub.s32 512, 512
      %79 = vsyncadd [#allocation12], %s78
      %s80 = sshll.u32 [#allocation13], 4
      %s81 = int_to_ptr.vmem [resolvable:$true] %s80
      %86 = dma.hbm_to_vmem [thread:$0]  %s4, 512, %s81, [#allocation12], 128, 128, 8
    $region21: #{tpu_custom_call.1} parent=1 // pred_fallthru
      _
    // Predicated region
    $region22: #{tpu_custom_call.1} parent=1 // pred_check
      _
    $region23: #{tpu_custom_call.1} parent=1 // pred_check_branch
      %88 = sbr.rel (0) target = $region25
    $region24: #{tpu_custom_call.1} parent=1 // pred_region
      %s90 = ssub.s32 512, 512
      %91 = vsyncadd [#allocation15], %s90
      %s92 = sshll.u32 [#allocation14], 4
      %s93 = int_to_ptr.vmem [resolvable:$true] %s92
      %98 = dma.hbm_to_vmem [thread:$0]  %s5, 512, %s93, [#allocation15], 128, 128, 8
    $region25: #{tpu_custom_call.1} parent=1 // pred_fallthru
      _
    // Predicated region
    $region26: #{tpu_custom_call.1} parent=1 // pred_check
      _
    $region27: #{tpu_custom_call.1} parent=1 // pred_check_branch
      %100 = sbr.rel (0) target = $region29
    $region28: #{tpu_custom_call.1} parent=1 // pred_region
      %s102 = ssub.s32 512, 512
      %103 = vsyncadd [#allocation15], %s102
      %s104 = sshll.u32 [#allocation16], 4
      %s105 = int_to_ptr.vmem [resolvable:$true] %s104
      %110 = dma.hbm_to_vmem [thread:$0]  %s6, 512, %s105, [#allocation15], 128, 128, 8
    $region29: #{tpu_custom_call.1} parent=1 // pred_fallthru
      _
    // Predicated region
    $region30: #{tpu_custom_call.1} parent=1 // pred_check
      _
    $region31: #{tpu_custom_call.1} parent=1 // pred_check_branch
      %112 = sbr.rel (0) target = $region33
    $region32: #{tpu_custom_call.1} parent=1 // pred_region
      %s114 = ssub.s32 16, 16
      %115 = vsyncadd [#allocation18], %s114
      %s117 = sshll.u32 [#allocation17], 4
      %s118 = int_to_ptr.vmem [resolvable:$true] %s117
      %120 = dma.hbm_to_vmem [thread:$0]  %s7, 16, %s118, [#allocation18]
    $region33: #{tpu_custom_call.1} parent=1 // pred_fallthru
      _
    // Predicated region
    $region34: #{tpu_custom_call.1} parent=1 // pred_check
      _
    $region35: #{tpu_custom_call.1} parent=1 // pred_check_branch
      %122 = sbr.rel (0) target = $region37
    $region36: #{tpu_custom_call.1} parent=1 // pred_region
      %s124 = ssub.s32 16, 16
      %125 = vsyncadd [#allocation18], %s124
      %s127 = sshll.u32 [#allocation19], 4
      %s128 = int_to_ptr.vmem [resolvable:$true] %s127
      %130 = dma.hbm_to_vmem [thread:$0]  %s8, 16, %s128, [#allocation18]
    $region37: #{tpu_custom_call.1} parent=1 // pred_fallthru
      _
    // Predicated region
    $region38: #{tpu_custom_call.1} parent=1 // pred_check
      _
    $region39: #{tpu_custom_call.1} parent=1 // pred_check_branch
      %132 = sbr.rel (0) target = $region41
    $region40: #{tpu_custom_call.1} parent=1 // pred_region
      %s134 = ssub.s32 16, 16
      %135 = vsyncadd [#allocation21], %s134
      %s137 = sshll.u32 [#allocation20], 4
      %s138 = int_to_ptr.vmem [resolvable:$true] %s137
      %140 = dma.hbm_to_vmem [thread:$0]  %s9, 16, %s138, [#allocation21]
    $region41: #{tpu_custom_call.1} parent=1 // pred_fallthru
      _
    // Predicated region
    $region42: #{tpu_custom_call.1} parent=1 // pred_check
      _
    $region43: #{tpu_custom_call.1} parent=1 // pred_check_branch
      %142 = sbr.rel (0) target = $region45
    $region44: #{tpu_custom_call.1} parent=1 // pred_region
      _
    $region45: #{tpu_custom_call.1} parent=1 // pred_fallthru
      _
    // Predicated region
    $region46: #{tpu_custom_call.1} parent=1 // pred_check
      _
    $region47: #{tpu_custom_call.1} parent=1 // pred_check_branch
      %144 = sbr.rel (0) target = $region49
    $region48: #{tpu_custom_call.1} parent=1 // pred_region
      %145 = dma.done [#allocation6], 1024
    $region49: #{tpu_custom_call.1} parent=1 // pred_fallthru
      _
    // Predicated region
    $region50: #{tpu_custom_call.1} parent=1 // pred_check
      _
    $region51: #{tpu_custom_call.1} parent=1 // pred_check_branch
      %147 = sbr.rel (0) target = $region53
    $region52: #{tpu_custom_call.1} parent=1 // pred_region
      %148 = dma.done [#allocation9], 256
    $region53: #{tpu_custom_call.1} parent=1 // pred_fallthru
      _
    // Predicated region
    $region54: #{tpu_custom_call.1} parent=1 // pred_check
      _
    $region55: #{tpu_custom_call.1} parent=1 // pred_check_branch
      %150 = sbr.rel (0) target = $region57
    $region56: #{tpu_custom_call.1} parent=1 // pred_region
      %151 = dma.done [#allocation9], 256
    $region57: #{tpu_custom_call.1} parent=1 // pred_fallthru
      _
    // Predicated region
    $region58: #{tpu_custom_call.1} parent=1 // pred_check
      _
    $region59: #{tpu_custom_call.1} parent=1 // pred_check_branch
      %153 = sbr.rel (0) target = $region61
    $region60: #{tpu_custom_call.1} parent=1 // pred_region
      %154 = dma.done [#allocation12], 128
    $region61: #{tpu_custom_call.1} parent=1 // pred_fallthru
      _
    // Predicated region
    $region62: #{tpu_custom_call.1} parent=1 // pred_check
      _
    $region63: #{tpu_custom_call.1} parent=1 // pred_check_branch
      %156 = sbr.rel (0) target = $region65
    $region64: #{tpu_custom_call.1} parent=1 // pred_region
      %157 = dma.done [#allocation12], 512
    $region65: #{tpu_custom_call.1} parent=1 // pred_fallthru
      _
    // Predicated region
    $region66: #{tpu_custom_call.1} parent=1 // pred_check
      _
    $region67: #{tpu_custom_call.1} parent=1 // pred_check_branch
      %159 = sbr.rel (0) target = $region69
    $region68: #{tpu_custom_call.1} parent=1 // pred_region
      %160 = dma.done [#allocation15], 512
    $region69: #{tpu_custom_call.1} parent=1 // pred_fallthru
      _
    // Predicated region
    $region70: #{tpu_custom_call.1} parent=1 // pred_check
      _
    $region71: #{tpu_custom_call.1} parent=1 // pred_check_branch
      %162 = sbr.rel (0) target = $region73
    $region72: #{tpu_custom_call.1} parent=1 // pred_region
      %163 = dma.done [#allocation15], 512
    $region73: #{tpu_custom_call.1} parent=1 // pred_fallthru
      _
    // Predicated region
    $region74: #{tpu_custom_call.1} parent=1 // pred_check
      _
    $region75: #{tpu_custom_call.1} parent=1 // pred_check_branch
      %165 = sbr.rel (0) target = $region77
    $region76: #{tpu_custom_call.1} parent=1 // pred_region
      %166 = dma.done [#allocation18], 16
    $region77: #{tpu_custom_call.1} parent=1 // pred_fallthru
      _
    // Predicated region
    $region78: #{tpu_custom_call.1} parent=1 // pred_check
      _
    $region79: #{tpu_custom_call.1} parent=1 // pred_check_branch
      %168 = sbr.rel (0) target = $region81
    $region80: #{tpu_custom_call.1} parent=1 // pred_region
      %169 = dma.done [#allocation18], 16
    $region81: #{tpu_custom_call.1} parent=1 // pred_fallthru
      _
    // Predicated region
    $region82: #{tpu_custom_call.1} parent=1 // pred_check
      _
    $region83: #{tpu_custom_call.1} parent=1 // pred_check_branch
      %171 = sbr.rel (0) target = $region85
    $region84: #{tpu_custom_call.1} parent=1 // pred_region
      %172 = dma.done [#allocation21], 16
    $region85: #{tpu_custom_call.1} parent=1 // pred_fallthru
      _
    %v173 = vld [vmem:[#allocation5] sm:$0xff]
    %v174 = vld [vmem:[#allocation5 + $0x8] sm:$0xff]
    %v175 = vld [vmem:[#allocation5 + $0x10] sm:$0xff]
    %v176 = vld [vmem:[#allocation5 + $0x18] sm:$0xff]
    %v177 = vld [vmem:[#allocation5 + $0x20] sm:$0xff]
    %v178 = vld [vmem:[#allocation5 + $0x28] sm:$0xff]
    %v179 = vld [vmem:[#allocation5 + $0x30] sm:$0xff]
    %v180 = vld [vmem:[#allocation5 + $0x38] sm:$0xff]
    %v181 = vld [vmem:[#allocation11] sm:$0xff]
    %v182 = vld [vmem:[#allocation17] sm:$0x1]
    %v184 = vlaneseq
    %v185 = vshrl.u32 %v184, 7
    %v186 = vsub.s32 0, %v185
    %v187 = vrot.slane %v182, %v186
    %vm189 = vcmask 64512
    %v191 = vsel %vm189, %v173, 0
    %v194 = vsel %vm189, %v174, 0
    %v197 = vsel %vm189, %v175, 0
    %v200 = vsel %vm189, %v176, 0
    %v203 = vsel %vm189, %v177, 0
    %v206 = vsel %vm189, %v178, 0
    %v209 = vsel %vm189, %v179, 0
    %v212 = vsel %vm189, %v180, 0
    %214 = vmatprep.subr.mxu0 0.0
    %215 = vmatpush1.msra.mxu0 %v181
    %216 = vmatprep.subr.mxu0 0.0
    %217 = vmatpush1.msra.mxu0 0.0
    %218 = vmatprep.subr.mxu0 0.0
    %219 = vmatpush1.msra.mxu0 0.0
    %220 = vmatprep.subr.mxu0 0.0
    %221 = vmatpush1.msra.mxu0 0.0
    %222 = vmatprep.subr.mxu0 0.0
    %223 = vmatpush1.msra.mxu0 0.0
    %224 = vmatprep.subr.mxu0 0.0
    %225 = vmatpush1.msra.mxu0 0.0
    %226 = vmatprep.subr.mxu0 0.0
    %227 = vmatpush1.msra.mxu0 0.0
    %228 = vmatprep.subr.mxu0 0.0
    %229 = vmatpush1.msra.mxu0 0.0
    %230 = vmatprep.subr.mxu0 0.0
    %231 = vmatpush1.msra.mxu0 0.0
    %232 = vmatprep.subr.mxu0 0.0
    %233 = vmatpush1.msra.mxu0 0.0
    %234 = vmatprep.subr.mxu0 0.0
    %235 = vmatpush1.msra.mxu0 0.0
    %236 = vmatprep.subr.mxu0 0.0
    %237 = vmatpush1.msra.mxu0 0.0
    %238 = vmatprep.subr.mxu0 0.0
    %239 = vmatpush1.msra.mxu0 0.0
    %240 = vmatprep.subr.mxu0 0.0
    %241 = vmatpush1.msra.mxu0 0.0
    %242 = vmatprep.subr.mxu0 0.0
    %243 = vmatpush1.msra.mxu0 0.0
    %244 = vmatprep.subr.mxu0 0.0
    %245 = vmatpush1.msra.mxu0 0.0
    %246 = vmatprep.subr.mxu0 0.0
    %247 = vmatpush1.msra.mxu0 0.0
    %248 = vmatprep.subr.mxu0 0.0
    %249 = vmatpush1.msra.mxu0 0.0
    %250 = vmatprep.subr.mxu0 0.0
    %251 = vmatpush1.msra.mxu0 0.0
    %252 = vmatprep.subr.mxu0 0.0
    %253 = vmatpush1.msra.mxu0 0.0
    %254 = vmatprep.subr.mxu0 0.0
    %255 = vmatpush1.msra.mxu0 0.0
    %256 = vmatprep.subr.mxu0 0.0
    %257 = vmatpush1.msra.mxu0 0.0
    %258 = vmatprep.subr.mxu0 0.0
    %259 = vmatpush1.msra.mxu0 0.0
    %260 = vmatprep.subr.mxu0 0.0
    %261 = vmatpush1.msra.mxu0 0.0
    %262 = vmatprep.subr.mxu0 0.0
    %263 = vmatpush1.msra.mxu0 0.0
    %264 = vmatprep.subr.mxu0 0.0
    %265 = vmatpush1.msra.mxu0 0.0
    %266 = vmatprep.subr.mxu0 0.0
    %267 = vmatpush1.msra.mxu0 0.0
    %268 = vmatprep.subr.mxu0 0.0
    %269 = vmatpush1.msra.mxu0 0.0
    %270 = vmatprep.subr.mxu0 0.0
    %271 = vmatpush1.msra.mxu0 0.0
    %272 = vmatprep.subr.mxu0 0.0
    %273 = vmatpush1.msra.mxu0 0.0
    %274 = vmatprep.subr.mxu0 0.0
    %275 = vmatpush1.msra.mxu0 0.0
    %276 = vmatprep.subr.mxu0 0.0
    %277 = vmatpush1.msra.mxu0 0.0
    %278 = vmatprep.mubr.f32.mxu0 0.0
    %279 = vmatmul.mubr.f32.gmra.mrb[0].mxu0 %v191
    %v280 = vpop.f32.mrb[0].mxu0
    %v281 = vadd.f32 %v187, %v280
    %v282 = vpop.f32.mrb[0].mxu0
    %283 = vmatprep.mubr.f32.mxu0 0.0
    %284 = vmatmul.mubr.f32.gmra.mrb[0].mxu0 %v194
    %v285 = vpop.f32.mrb[0].mxu0
    %v286 = vadd.f32 %v187, %v285
    %v287 = vpop.f32.mrb[0].mxu0
    %288 = vmatprep.mubr.f32.mxu0 0.0
    %289 = vmatmul.mubr.f32.gmra.mrb[0].mxu0 %v197
    %v290 = vpop.f32.mrb[0].mxu0
    %v291 = vadd.f32 %v187, %v290
    %v292 = vpop.f32.mrb[0].mxu0
    %293 = vmatprep.mubr.f32.mxu0 0.0
    %294 = vmatmul.mubr.f32.gmra.mrb[0].mxu0 %v200
    %v295 = vpop.f32.mrb[0].mxu0
    %v296 = vadd.f32 %v187, %v295
    %v297 = vpop.f32.mrb[0].mxu0
    %298 = vmatprep.mubr.f32.mxu0 0.0
    %299 = vmatmul.mubr.f32.gmra.mrb[0].mxu0 %v203
    %v300 = vpop.f32.mrb[0].mxu0
    %v301 = vadd.f32 %v187, %v300
    %v302 = vpop.f32.mrb[0].mxu0
    %303 = vmatprep.mubr.f32.mxu0 0.0
    %304 = vmatmul.mubr.f32.gmra.mrb[0].mxu0 %v206
    %v305 = vpop.f32.mrb[0].mxu0
    %v306 = vadd.f32 %v187, %v305
    %v307 = vpop.f32.mrb[0].mxu0
    %308 = vmatprep.mubr.f32.mxu0 0.0
    %309 = vmatmul.mubr.f32.gmra.mrb[0].mxu0 %v209
    %v310 = vpop.f32.mrb[0].mxu0
    %v311 = vadd.f32 %v187, %v310
    %v312 = vpop.f32.mrb[0].mxu0
    %313 = vmatprep.mubr.f32.mxu0 0.0
    %314 = vmatmul.mubr.f32.gmra.mrb[0].mxu0 %v212
    %v315 = vpop.f32.mrb[0].mxu0
    %v316 = vadd.f32 %v187, %v315
    %v317 = vpop.f32.mrb[0].mxu0
    %318 = vdwg.mxu0
    %319 = vst [vmem:[#allocation3] sm:$0xff] %v281
    %320 = vst [vmem:[#allocation3 + $0x8] sm:$0xff] %v286
    %321 = vst [vmem:[#allocation3 + $0x10] sm:$0xff] %v291
    %322 = vst [vmem:[#allocation3 + $0x18] sm:$0xff] %v296
    %323 = vst [vmem:[#allocation3 + $0x20] sm:$0xff] %v301
    %324 = vst [vmem:[#allocation3 + $0x28] sm:$0xff] %v306
    %325 = vst [vmem:[#allocation3 + $0x30] sm:$0xff] %v311
    %326 = vst [vmem:[#allocation3 + $0x38] sm:$0xff] %v316
    %v327 = vld [vmem:[#allocation8] sm:$0xff]
    %v328 = vld [vmem:[#allocation10] sm:$0xff]
    %v329 = vld [vmem:[#allocation3] sm:$0xff]
    %v330 = vld [vmem:[#allocation14] sm:$0xff]
    %v331 = vld [vmem:[#allocation14 + $0x8] sm:$0xff]
    %v332 = vld [vmem:[#allocation14 + $0x10] sm:$0xff]
    %v333 = vld [vmem:[#allocation14 + $0x18] sm:$0xff]
    %vm334 = vcmask 261120
    %v336 = vsel %vm334, %v327, 0
    %338 = vmatprep.subr.mxu0 0.0
    %339 = vmatpush1.msra.mxu0 %v330
    %340 = vmatprep.subr.mxu0 0.0
    %341 = vmatpush1.msra.mxu0 %v331
    %342 = vmatprep.subr.mxu0 0.0
    %343 = vmatpush1.msra.mxu0 %v332
    %344 = vmatprep.subr.mxu0 0.0
    %345 = vmatpush1.msra.mxu0 %v333
    %346 = vmatprep.subr.mxu0 0.0
    %347 = vmatpush1.msra.mxu0 0.0
    %348 = vmatprep.subr.mxu0 0.0
    %349 = vmatpush1.msra.mxu0 0.0
    %350 = vmatprep.subr.mxu0 0.0
    %351 = vmatpush1.msra.mxu0 0.0
    %352 = vmatprep.subr.mxu0 0.0
    %353 = vmatpush1.msra.mxu0 0.0
    %354 = vmatprep.subr.mxu0 0.0
    %355 = vmatpush1.msra.mxu0 0.0
    %356 = vmatprep.subr.mxu0 0.0
    %357 = vmatpush1.msra.mxu0 0.0
    %358 = vmatprep.subr.mxu0 0.0
    %359 = vmatpush1.msra.mxu0 0.0
    %360 = vmatprep.subr.mxu0 0.0
    %361 = vmatpush1.msra.mxu0 0.0
    %362 = vmatprep.subr.mxu0 0.0
    %363 = vmatpush1.msra.mxu0 0.0
    %364 = vmatprep.subr.mxu0 0.0
    %365 = vmatpush1.msra.mxu0 0.0
    %366 = vmatprep.subr.mxu0 0.0
    %367 = vmatpush1.msra.mxu0 0.0
    %368 = vmatprep.subr.mxu0 0.0
    %369 = vmatpush1.msra.mxu0 0.0
    %370 = vmatprep.subr.mxu0 0.0
    %371 = vmatpush1.msra.mxu0 0.0
    %372 = vmatprep.subr.mxu0 0.0
    %373 = vmatpush1.msra.mxu0 0.0
    %374 = vmatprep.subr.mxu0 0.0
    %375 = vmatpush1.msra.mxu0 0.0
    %376 = vmatprep.subr.mxu0 0.0
    %377 = vmatpush1.msra.mxu0 0.0
    %378 = vmatprep.subr.mxu0 0.0
    %379 = vmatpush1.msra.mxu0 0.0
    %380 = vmatprep.subr.mxu0 0.0
    %381 = vmatpush1.msra.mxu0 0.0
    %382 = vmatprep.subr.mxu0 0.0
    %383 = vmatpush1.msra.mxu0 0.0
    %384 = vmatprep.subr.mxu0 0.0
    %385 = vmatpush1.msra.mxu0 0.0
    %386 = vmatprep.subr.mxu0 0.0
    %387 = vmatpush1.msra.mxu0 0.0
    %388 = vmatprep.subr.mxu0 0.0
    %389 = vmatpush1.msra.mxu0 0.0
    %390 = vmatprep.subr.mxu0 0.0
    %391 = vmatpush1.msra.mxu0 0.0
    %392 = vmatprep.subr.mxu0 0.0
    %393 = vmatpush1.msra.mxu0 0.0
    %394 = vmatprep.subr.mxu0 0.0
    %395 = vmatpush1.msra.mxu0 0.0
    %396 = vmatprep.subr.mxu0 0.0
    %397 = vmatpush1.msra.mxu0 0.0
    %398 = vmatprep.subr.mxu0 0.0
    %399 = vmatpush1.msra.mxu0 0.0
    %400 = vmatprep.subr.mxu0 0.0
    %401 = vmatpush1.msra.mxu0 0.0
    %402 = vmatprep.mubr.f32.mxu0 0.0
    %403 = vmatmul.mubr.f32.gmra.mrb[0].mxu0 %v336
    %v404 = vpop.f32.mrb[0].mxu0
    %v405 = vadd.f32 0.0, %v404
    %v406 = vpop.f32.mrb[0].mxu0
    %407 = vdwg.mxu0
    %v408 = vadd.f32 %v329, %v405
    %v409 = vxor.u32 %v408, 2147483648
    %v410 = vmul.f32 %v409, 1.442695
    %v411 = vpow.pop %v410
    %v412 = vadd.f32 %v411, 1.0
    %v413 = vrcp.pop %v412
    %v414 = vmul.f32 1.0, %v413
    %v415 = vtanh.pop %v408
    %417 = vrot.lane.b32.xlu0 %v328, 32
    %v418 = vpop.permute.xlu0 %417
    %v420 = vmul.f32 %v414, %v418
    %422 = vrot.lane.b32.xlu0 %v415, 64
    %v423 = vpop.permute.xlu0 %422
    %v425 = vmul.f32 %v414, %v423
    %427 = vrot.lane.b32.xlu0 %v425, 32
    %v428 = vpop.permute.xlu0 %427
    %v430 = vadd.f32 %v420, %v428
    %v431 = vtanh.pop %v430
    %433 = vrot.lane.b32.xlu0 %v431, 64
    %v434 = vpop.permute.xlu0 %433
    %v436 = vmul.f32 %v414, %v434
    %438 = vrot.lane.b32.xlu0 %v436, 32
    %v439 = vpop.permute.xlu0 %438
    %441 = vst.msk [vmem:[#allocation2] sm:$0xff] %vm334, %v439
    %s442 = scalar_lea.vmem [#allocation3], 8
    %v443 = vld [vmem:[%s442] sm:$0xff]
    %v444 = vld [vmem:[#allocation14] sm:$0xff]
    %v445 = vld [vmem:[#allocation14 + $0x8] sm:$0xff]
    %v446 = vld [vmem:[#allocation14 + $0x10] sm:$0xff]
    %v447 = vld [vmem:[#allocation14 + $0x18] sm:$0xff]
    %v448 = vsel %vm334, %v439, 0
    %450 = vmatprep.subr.mxu0 0.0
    %451 = vmatpush1.msra.mxu0 %v444
    %452 = vmatprep.subr.mxu0 0.0
    %453 = vmatpush1.msra.mxu0 %v445
    %454 = vmatprep.subr.mxu0 0.0
    %455 = vmatpush1.msra.mxu0 %v446
    %456 = vmatprep.subr.mxu0 0.0
    %457 = vmatpush1.msra.mxu0 %v447
    %458 = vmatprep.subr.mxu0 0.0
    %459 = vmatpush1.msra.mxu0 0.0
    %460 = vmatprep.subr.mxu0 0.0
    %461 = vmatpush1.msra.mxu0 0.0
    %462 = vmatprep.subr.mxu0 0.0
    %463 = vmatpush1.msra.mxu0 0.0
    %464 = vmatprep.subr.mxu0 0.0
    %465 = vmatpush1.msra.mxu0 0.0
    %466 = vmatprep.subr.mxu0 0.0
    %467 = vmatpush1.msra.mxu0 0.0
    %468 = vmatprep.subr.mxu0 0.0
    %469 = vmatpush1.msra.mxu0 0.0
    %470 = vmatprep.subr.mxu0 0.0
    %471 = vmatpush1.msra.mxu0 0.0
    %472 = vmatprep.subr.mxu0 0.0
    %473 = vmatpush1.msra.mxu0 0.0
    %474 = vmatprep.subr.mxu0 0.0
    %475 = vmatpush1.msra.mxu0 0.0
    %476 = vmatprep.subr.mxu0 0.0
    %477 = vmatpush1.msra.mxu0 0.0
    %478 = vmatprep.subr.mxu0 0.0
    %479 = vmatpush1.msra.mxu0 0.0
    %480 = vmatprep.subr.mxu0 0.0
    %481 = vmatpush1.msra.mxu0 0.0
    %482 = vmatprep.subr.mxu0 0.0
    %483 = vmatpush1.msra.mxu0 0.0
    %484 = vmatprep.subr.mxu0 0.0
    %485 = vmatpush1.msra.mxu0 0.0
    %486 = vmatprep.subr.mxu0 0.0
    %487 = vmatpush1.msra.mxu0 0.0
    %488 = vmatprep.subr.mxu0 0.0
    %489 = vmatpush1.msra.mxu0 0.0
    %490 = vmatprep.subr.mxu0 0.0
    %491 = vmatpush1.msra.mxu0 0.0
    %492 = vmatprep.subr.mxu0 0.0
    %493 = vmatpush1.msra.mxu0 0.0
    %494 = vmatprep.subr.mxu0 0.0
    %495 = vmatpush1.msra.mxu0 0.0
    %496 = vmatprep.subr.mxu0 0.0
    %497 = vmatpush1.msra.mxu0 0.0
    %498 = vmatprep.subr.mxu0 0.0
    %499 = vmatpush1.msra.mxu0 0.0
    %500 = vmatprep.subr.mxu0 0.0
    %501 = vmatpush1.msra.mxu0 0.0
    %502 = vmatprep.subr.mxu0 0.0
    %503 = vmatpush1.msra.mxu0 0.0
    %504 = vmatprep.subr.mxu0 0.0
    %505 = vmatpush1.msra.mxu0 0.0
    %506 = vmatprep.subr.mxu0 0.0
    %507 = vmatpush1.msra.mxu0 0.0
    %508 = vmatprep.subr.mxu0 0.0
    %509 = vmatpush1.msra.mxu0 0.0
    %510 = vmatprep.subr.mxu0 0.0
    %511 = vmatpush1.msra.mxu0 0.0
    %512 = vmatprep.subr.mxu0 0.0
    %513 = vmatpush1.msra.mxu0 0.0
    %514 = vmatprep.mubr.f32.mxu0 0.0
    %515 = vmatmul.mubr.f32.gmra.mrb[0].mxu0 %v448
    %v516 = vpop.f32.mrb[0].mxu0
    %v517 = vadd.f32 0.0, %v516
    %v518 = vpop.f32.mrb[0].mxu0
    %519 = vdwg.mxu0
    %v520 = vadd.f32 %v443, %v517
    %v521 = vxor.u32 %v520, 2147483648
    %v522 = vmul.f32 %v521, 1.442695
    %v523 = vpow.pop %v522
    %v524 = vadd.f32 %v523, 1.0
    %v525 = vrcp.pop %v524
    %v526 = vmul.f32 1.0, %v525
    %v527 = vtanh.pop %v520
    %v528 = vmul.f32 %v526, %v430
    %530 = vrot.lane.b32.xlu0 %v527, 64
    %v531 = vpop.permute.xlu0 %530
    %v533 = vmul.f32 %v526, %v531
    %535 = vrot.lane.b32.xlu0 %v533, 32
    %v536 = vpop.permute.xlu0 %535
    %v538 = vadd.f32 %v528, %v536
    %v539 = vtanh.pop %v538
    %541 = vrot.lane.b32.xlu0 %v539, 64
    %v542 = vpop.permute.xlu0 %541
    %v544 = vmul.f32 %v526, %v542
    %546 = vrot.lane.b32.xlu0 %v544, 32
    %v547 = vpop.permute.xlu0 %546
    %s549 = scalar_lea.vmem [#allocation2], 8
    %550 = vst.msk [vmem:[%s549] sm:$0xff] %vm334, %v547
    %s551 = scalar_lea.vmem [#allocation3], 16
    %v552 = vld [vmem:[%s551] sm:$0xff]
    %v553 = vld [vmem:[#allocation14] sm:$0xff]
    %v554 = vld [vmem:[#allocation14 + $0x8] sm:$0xff]
    %v555 = vld [vmem:[#allocation14 + $0x10] sm:$0xff]
    %v556 = vld [vmem:[#allocation14 + $0x18] sm:$0xff]
    %v557 = vsel %vm334, %v547, 0
    %559 = vmatprep.subr.mxu0 0.0
    %560 = vmatpush1.msra.mxu0 %v553
    %561 = vmatprep.subr.mxu0 0.0
    %562 = vmatpush1.msra.mxu0 %v554
    %563 = vmatprep.subr.mxu0 0.0
    %564 = vmatpush1.msra.mxu0 %v555
    %565 = vmatprep.subr.mxu0 0.0
    %566 = vmatpush1.msra.mxu0 %v556
    %567 = vmatprep.subr.mxu0 0.0
    %568 = vmatpush1.msra.mxu0 0.0
    %569 = vmatprep.subr.mxu0 0.0
    %570 = vmatpush1.msra.mxu0 0.0
    %571 = vmatprep.subr.mxu0 0.0
    %572 = vmatpush1.msra.mxu0 0.0
    %573 = vmatprep.subr.mxu0 0.0
    %574 = vmatpush1.msra.mxu0 0.0
    %575 = vmatprep.subr.mxu0 0.0
    %576 = vmatpush1.msra.mxu0 0.0
    %577 = vmatprep.subr.mxu0 0.0
    %578 = vmatpush1.msra.mxu0 0.0
    %579 = vmatprep.subr.mxu0 0.0
    %580 = vmatpush1.msra.mxu0 0.0
    %581 = vmatprep.subr.mxu0 0.0
    %582 = vmatpush1.msra.mxu0 0.0
    %583 = vmatprep.subr.mxu0 0.0
    %584 = vmatpush1.msra.mxu0 0.0
    %585 = vmatprep.subr.mxu0 0.0
    %586 = vmatpush1.msra.mxu0 0.0
    %587 = vmatprep.subr.mxu0 0.0
    %588 = vmatpush1.msra.mxu0 0.0
    %589 = vmatprep.subr.mxu0 0.0
    %590 = vmatpush1.msra.mxu0 0.0
    %591 = vmatprep.subr.mxu0 0.0
    %592 = vmatpush1.msra.mxu0 0.0
    %593 = vmatprep.subr.mxu0 0.0
    %594 = vmatpush1.msra.mxu0 0.0
    %595 = vmatprep.subr.mxu0 0.0
    %596 = vmatpush1.msra.mxu0 0.0
    %597 = vmatprep.subr.mxu0 0.0
    %598 = vmatpush1.msra.mxu0 0.0
    %599 = vmatprep.subr.mxu0 0.0
    %600 = vmatpush1.msra.mxu0 0.0
    %601 = vmatprep.subr.mxu0 0.0
    %602 = vmatpush1.msra.mxu0 0.0
    %603 = vmatprep.subr.mxu0 0.0
    %604 = vmatpush1.msra.mxu0 0.0
    %605 = vmatprep.subr.mxu0 0.0
    %606 = vmatpush1.msra.mxu0 0.0
    %607 = vmatprep.subr.mxu0 0.0
    %608 = vmatpush1.msra.mxu0 0.0
    %609 = vmatprep.subr.mxu0 0.0
    %610 = vmatpush1.msra.mxu0 0.0
    %611 = vmatprep.subr.mxu0 0.0
    %612 = vmatpush1.msra.mxu0 0.0
    %613 = vmatprep.subr.mxu0 0.0
    %614 = vmatpush1.msra.mxu0 0.0
    %615 = vmatprep.subr.mxu0 0.0
    %616 = vmatpush1.msra.mxu0 0.0
    %617 = vmatprep.subr.mxu0 0.0
    %618 = vmatpush1.msra.mxu0 0.0
    %619 = vmatprep.subr.mxu0 0.0
    %620 = vmatpush1.msra.mxu0 0.0
    %621 = vmatprep.subr.mxu0 0.0
    %622 = vmatpush1.msra.mxu0 0.0
    %623 = vmatprep.mubr.f32.mxu0 0.0
    %624 = vmatmul.mubr.f32.gmra.mrb[0].mxu0 %v557
    %v625 = vpop.f32.mrb[0].mxu0
    %v626 = vadd.f32 0.0, %v625
    %v627 = vpop.f32.mrb[0].mxu0
    %628 = vdwg.mxu0
    %v629 = vadd.f32 %v552, %v626
    %v630 = vxor.u32 %v629, 2147483648
    %v631 = vmul.f32 %v630, 1.442695
    %v632 = vpow.pop %v631
    %v633 = vadd.f32 %v632, 1.0
    %v634 = vrcp.pop %v633
    %v635 = vmul.f32 1.0, %v634
    %v636 = vtanh.pop %v629
    %v637 = vmul.f32 %v635, %v538
    %639 = vrot.lane.b32.xlu0 %v636, 64
    %v640 = vpop.permute.xlu0 %639
    %v642 = vmul.f32 %v635, %v640
    %644 = vrot.lane.b32.xlu0 %v642, 32
    %v645 = vpop.permute.xlu0 %644
    %v647 = vadd.f32 %v637, %v645
    %v648 = vtanh.pop %v647
    %650 = vrot.lane.b32.xlu0 %v648, 64
    %v651 = vpop.permute.xlu0 %650
    %v653 = vmul.f32 %v635, %v651
    %655 = vrot.lane.b32.xlu0 %v653, 32
    %v656 = vpop.permute.xlu0 %655
    %s658 = scalar_lea.vmem [#allocation2], 16
    %659 = vst.msk [vmem:[%s658] sm:$0xff] %vm334, %v656
    %s660 = scalar_lea.vmem [#allocation3], 24
    %v661 = vld [vmem:[%s660] sm:$0xff]
    %v662 = vld [vmem:[#allocation14] sm:$0xff]
    %v663 = vld [vmem:[#allocation14 + $0x8] sm:$0xff]
    %v664 = vld [vmem:[#allocation14 + $0x10] sm:$0xff]
    %v665 = vld [vmem:[#allocation14 + $0x18] sm:$0xff]
    %v666 = vsel %vm334, %v656, 0
    %668 = vmatprep.subr.mxu0 0.0
    %669 = vmatpush1.msra.mxu0 %v662
    %670 = vmatprep.subr.mxu0 0.0
    %671 = vmatpush1.msra.mxu0 %v663
    %672 = vmatprep.subr.mxu0 0.0
    %673 = vmatpush1.msra.mxu0 %v664
    %674 = vmatprep.subr.mxu0 0.0
    %675 = vmatpush1.msra.mxu0 %v665
    %676 = vmatprep.subr.mxu0 0.0
    %677 = vmatpush1.msra.mxu0 0.0
    %678 = vmatprep.subr.mxu0 0.0
    %679 = vmatpush1.msra.mxu0 0.0
    %680 = vmatprep.subr.mxu0 0.0
    %681 = vmatpush1.msra.mxu0 0.0
    %682 = vmatprep.subr.mxu0 0.0
    %683 = vmatpush1.msra.mxu0 0.0
    %684 = vmatprep.subr.mxu0 0.0
    %685 = vmatpush1.msra.mxu0 0.0
    %686 = vmatprep.subr.mxu0 0.0
    %687 = vmatpush1.msra.mxu0 0.0
    %688 = vmatprep.subr.mxu0 0.0
    %689 = vmatpush1.msra.mxu0 0.0
    %690 = vmatprep.subr.mxu0 0.0
    %691 = vmatpush1.msra.mxu0 0.0
    %692 = vmatprep.subr.mxu0 0.0
    %693 = vmatpush1.msra.mxu0 0.0
    %694 = vmatprep.subr.mxu0 0.0
    %695 = vmatpush1.msra.mxu0 0.0
    %696 = vmatprep.subr.mxu0 0.0
    %697 = vmatpush1.msra.mxu0 0.0
    %698 = vmatprep.subr.mxu0 0.0
    %699 = vmatpush1.msra.mxu0 0.0
    %700 = vmatprep.subr.mxu0 0.0
    %701 = vmatpush1.msra.mxu0 0.0
    %702 = vmatprep.subr.mxu0 0.0
    %703 = vmatpush1.msra.mxu0 0.0
    %704 = vmatprep.subr.mxu0 0.0
    %705 = vmatpush1.msra.mxu0 0.0
    %706 = vmatprep.subr.mxu0 0.0
    %707 = vmatpush1.msra.mxu0 0.0
    %708 = vmatprep.subr.mxu0 0.0
    %709 = vmatpush1.msra.mxu0 0.0
    %710 = vmatprep.subr.mxu0 0.0
    %711 = vmatpush1.msra.mxu0 0.0
    %712 = vmatprep.subr.mxu0 0.0
    %713 = vmatpush1.msra.mxu0 0.0
    %714 = vmatprep.subr.mxu0 0.0
    %715 = vmatpush1.msra.mxu0 0.0
    %716 = vmatprep.subr.mxu0 0.0
    %717 = vmatpush1.msra.mxu0 0.0
    %718 = vmatprep.subr.mxu0 0.0
    %719 = vmatpush1.msra.mxu0 0.0
    %720 = vmatprep.subr.mxu0 0.0
    %721 = vmatpush1.msra.mxu0 0.0
    %722 = vmatprep.subr.mxu0 0.0
    %723 = vmatpush1.msra.mxu0 0.0
    %724 = vmatprep.subr.mxu0 0.0
    %725 = vmatpush1.msra.mxu0 0.0
    %726 = vmatprep.subr.mxu0 0.0
    %727 = vmatpush1.msra.mxu0 0.0
    %728 = vmatprep.subr.mxu0 0.0
    %729 = vmatpush1.msra.mxu0 0.0
    %730 = vmatprep.subr.mxu0 0.0
    %731 = vmatpush1.msra.mxu0 0.0
    %732 = vmatprep.mubr.f32.mxu0 0.0
    %733 = vmatmul.mubr.f32.gmra.mrb[0].mxu0 %v666
    %v734 = vpop.f32.mrb[0].mxu0
    %v735 = vadd.f32 0.0, %v734
    %v736 = vpop.f32.mrb[0].mxu0
    %737 = vdwg.mxu0
    %v738 = vadd.f32 %v661, %v735
    %v739 = vxor.u32 %v738, 2147483648
    %v740 = vmul.f32 %v739, 1.442695
    %v741 = vpow.pop %v740
    %v742 = vadd.f32 %v741, 1.0
    %v743 = vrcp.pop %v742
    %v744 = vmul.f32 1.0, %v743
    %v745 = vtanh.pop %v738
    %v746 = vmul.f32 %v744, %v647
    %748 = vrot.lane.b32.xlu0 %v745, 64
    %v749 = vpop.permute.xlu0 %748
    %v751 = vmul.f32 %v744, %v749
    %753 = vrot.lane.b32.xlu0 %v751, 32
    %v754 = vpop.permute.xlu0 %753
    %v756 = vadd.f32 %v746, %v754
    %v757 = vtanh.pop %v756
    %759 = vrot.lane.b32.xlu0 %v757, 64
    %v760 = vpop.permute.xlu0 %759
    %v762 = vmul.f32 %v744, %v760
    %764 = vrot.lane.b32.xlu0 %v762, 32
    %v765 = vpop.permute.xlu0 %764
    %s767 = scalar_lea.vmem [#allocation2], 24
    %768 = vst.msk [vmem:[%s767] sm:$0xff] %vm334, %v765
    %s769 = scalar_lea.vmem [#allocation3], 32
    %v770 = vld [vmem:[%s769] sm:$0xff]
    %v771 = vld [vmem:[#allocation14] sm:$0xff]
    %v772 = vld [vmem:[#allocation14 + $0x8] sm:$0xff]
    %v773 = vld [vmem:[#allocation14 + $0x10] sm:$0xff]
    %v774 = vld [vmem:[#allocation14 + $0x18] sm:$0xff]
    %v775 = vsel %vm334, %v765, 0
    %777 = vmatprep.subr.mxu0 0.0
    %778 = vmatpush1.msra.mxu0 %v771
    %779 = vmatprep.subr.mxu0 0.0
    %780 = vmatpush1.msra.mxu0 %v772
    %781 = vmatprep.subr.mxu0 0.0
    %782 = vmatpush1.msra.mxu0 %v773
    %783 = vmatprep.subr.mxu0 0.0
    %784 = vmatpush1.msra.mxu0 %v774
    %785 = vmatprep.subr.mxu0 0.0
    %786 = vmatpush1.msra.mxu0 0.0
    %787 = vmatprep.subr.mxu0 0.0
    %788 = vmatpush1.msra.mxu0 0.0
    %789 = vmatprep.subr.mxu0 0.0
    %790 = vmatpush1.msra.mxu0 0.0
    %791 = vmatprep.subr.mxu0 0.0
    %792 = vmatpush1.msra.mxu0 0.0
    %793 = vmatprep.subr.mxu0 0.0
    %794 = vmatpush1.msra.mxu0 0.0
    %795 = vmatprep.subr.mxu0 0.0
    %796 = vmatpush1.msra.mxu0 0.0
    %797 = vmatprep.subr.mxu0 0.0
    %798 = vmatpush1.msra.mxu0 0.0
    %799 = vmatprep.subr.mxu0 0.0
    %800 = vmatpush1.msra.mxu0 0.0
    %801 = vmatprep.subr.mxu0 0.0
    %802 = vmatpush1.msra.mxu0 0.0
    %803 = vmatprep.subr.mxu0 0.0
    %804 = vmatpush1.msra.mxu0 0.0
    %805 = vmatprep.subr.mxu0 0.0
    %806 = vmatpush1.msra.mxu0 0.0
    %807 = vmatprep.subr.mxu0 0.0
    %808 = vmatpush1.msra.mxu0 0.0
    %809 = vmatprep.subr.mxu0 0.0
    %810 = vmatpush1.msra.mxu0 0.0
    %811 = vmatprep.subr.mxu0 0.0
    %812 = vmatpush1.msra.mxu0 0.0
    %813 = vmatprep.subr.mxu0 0.0
    %814 = vmatpush1.msra.mxu0 0.0
    %815 = vmatprep.subr.mxu0 0.0
    %816 = vmatpush1.msra.mxu0 0.0
    %817 = vmatprep.subr.mxu0 0.0
    %818 = vmatpush1.msra.mxu0 0.0
    %819 = vmatprep.subr.mxu0 0.0
    %820 = vmatpush1.msra.mxu0 0.0
    %821 = vmatprep.subr.mxu0 0.0
    %822 = vmatpush1.msra.mxu0 0.0
    %823 = vmatprep.subr.mxu0 0.0
    %824 = vmatpush1.msra.mxu0 0.0
    %825 = vmatprep.subr.mxu0 0.0
    %826 = vmatpush1.msra.mxu0 0.0
    %827 = vmatprep.subr.mxu0 0.0
    %828 = vmatpush1.msra.mxu0 0.0
    %829 = vmatprep.subr.mxu0 0.0
    %830 = vmatpush1.msra.mxu0 0.0
    %831 = vmatprep.subr.mxu0 0.0
    %832 = vmatpush1.msra.mxu0 0.0
    %833 = vmatprep.subr.mxu0 0.0
    %834 = vmatpush1.msra.mxu0 0.0
    %835 = vmatprep.subr.mxu0 0.0
    %836 = vmatpush1.msra.mxu0 0.0
    %837 = vmatprep.subr.mxu0 0.0
    %838 = vmatpush1.msra.mxu0 0.0
    %839 = vmatprep.subr.mxu0 0.0
    %840 = vmatpush1.msra.mxu0 0.0
    %841 = vmatprep.mubr.f32.mxu0 0.0
    %842 = vmatmul.mubr.f32.gmra.mrb[0].mxu0 %v775
    %v843 = vpop.f32.mrb[0].mxu0
    %v844 = vadd.f32 0.0, %v843
    %v845 = vpop.f32.mrb[0].mxu0
    %846 = vdwg.mxu0
    %v847 = vadd.f32 %v770, %v844
    %v848 = vxor.u32 %v847, 2147483648
    %v849 = vmul.f32 %v848, 1.442695
    %v850 = vpow.pop %v849
    %v851 = vadd.f32 %v850, 1.0
    %v852 = vrcp.pop %v851
    %v853 = vmul.f32 1.0, %v852
    %v854 = vtanh.pop %v847
    %v855 = vmul.f32 %v853, %v756
    %857 = vrot.lane.b32.xlu0 %v854, 64
    %v858 = vpop.permute.xlu0 %857
    %v860 = vmul.f32 %v853, %v858
    %862 = vrot.lane.b32.xlu0 %v860, 32
    %v863 = vpop.permute.xlu0 %862
    %v865 = vadd.f32 %v855, %v863
    %v866 = vtanh.pop %v865
    %868 = vrot.lane.b32.xlu0 %v866, 64
    %v869 = vpop.permute.xlu0 %868
    %v871 = vmul.f32 %v853, %v869
    %873 = vrot.lane.b32.xlu0 %v871, 32
    %v874 = vpop.permute.xlu0 %873
    %s876 = scalar_lea.vmem [#allocation2], 32
    %877 = vst.msk [vmem:[%s876] sm:$0xff] %vm334, %v874
    %s878 = scalar_lea.vmem [#allocation3], 40
    %v879 = vld [vmem:[%s878] sm:$0xff]
    %v880 = vld [vmem:[#allocation14] sm:$0xff]
    %v881 = vld [vmem:[#allocation14 + $0x8] sm:$0xff]
    %v882 = vld [vmem:[#allocation14 + $0x10] sm:$0xff]
    %v883 = vld [vmem:[#allocation14 + $0x18] sm:$0xff]
    %v884 = vsel %vm334, %v874, 0
    %886 = vmatprep.subr.mxu0 0.0
    %887 = vmatpush1.msra.mxu0 %v880
    %888 = vmatprep.subr.mxu0 0.0
    %889 = vmatpush1.msra.mxu0 %v881
    %890 = vmatprep.subr.mxu0 0.0
    %891 = vmatpush1.msra.mxu0 %v882
    %892 = vmatprep.subr.mxu0 0.0
    %893 = vmatpush1.msra.mxu0 %v883
    %894 = vmatprep.subr.mxu0 0.0
    %895 = vmatpush1.msra.mxu0 0.0
    %896 = vmatprep.subr.mxu0 0.0
    %897 = vmatpush1.msra.mxu0 0.0
    %898 = vmatprep.subr.mxu0 0.0
    %899 = vmatpush1.msra.mxu0 0.0
    %900 = vmatprep.subr.mxu0 0.0
    %901 = vmatpush1.msra.mxu0 0.0
    %902 = vmatprep.subr.mxu0 0.0
    %903 = vmatpush1.msra.mxu0 0.0
    %904 = vmatprep.subr.mxu0 0.0
    %905 = vmatpush1.msra.mxu0 0.0
    %906 = vmatprep.subr.mxu0 0.0
    %907 = vmatpush1.msra.mxu0 0.0
    %908 = vmatprep.subr.mxu0 0.0
    %909 = vmatpush1.msra.mxu0 0.0
    %910 = vmatprep.subr.mxu0 0.0
    %911 = vmatpush1.msra.mxu0 0.0
    %912 = vmatprep.subr.mxu0 0.0
    %913 = vmatpush1.msra.mxu0 0.0
    %914 = vmatprep.subr.mxu0 0.0
    %915 = vmatpush1.msra.mxu0 0.0
    %916 = vmatprep.subr.mxu0 0.0
    %917 = vmatpush1.msra.mxu0 0.0
    %918 = vmatprep.subr.mxu0 0.0
    %919 = vmatpush1.msra.mxu0 0.0
    %920 = vmatprep.subr.mxu0 0.0
    %921 = vmatpush1.msra.mxu0 0.0
    %922 = vmatprep.subr.mxu0 0.0
    %923 = vmatpush1.msra.mxu0 0.0
    %924 = vmatprep.subr.mxu0 0.0
    %925 = vmatpush1.msra.mxu0 0.0
    %926 = vmatprep.subr.mxu0 0.0
    %927 = vmatpush1.msra.mxu0 0.0
    %928 = vmatprep.subr.mxu0 0.0
    %929 = vmatpush1.msra.mxu0 0.0
    %930 = vmatprep.subr.mxu0 0.0
    %931 = vmatpush1.msra.mxu0 0.0
    %932 = vmatprep.subr.mxu0 0.0
    %933 = vmatpush1.msra.mxu0 0.0
    %934 = vmatprep.subr.mxu0 0.0
    %935 = vmatpush1.msra.mxu0 0.0
    %936 = vmatprep.subr.mxu0 0.0
    %937 = vmatpush1.msra.mxu0 0.0
    %938 = vmatprep.subr.mxu0 0.0
    %939 = vmatpush1.msra.mxu0 0.0
    %940 = vmatprep.subr.mxu0 0.0
    %941 = vmatpush1.msra.mxu0 0.0
    %942 = vmatprep.subr.mxu0 0.0
    %943 = vmatpush1.msra.mxu0 0.0
    %944 = vmatprep.subr.mxu0 0.0
    %945 = vmatpush1.msra.mxu0 0.0
    %946 = vmatprep.subr.mxu0 0.0
    %947 = vmatpush1.msra.mxu0 0.0
    %948 = vmatprep.subr.mxu0 0.0
    %949 = vmatpush1.msra.mxu0 0.0
    %950 = vmatprep.mubr.f32.mxu0 0.0
    %951 = vmatmul.mubr.f32.gmra.mrb[0].mxu0 %v884
    %v952 = vpop.f32.mrb[0].mxu0
    %v953 = vadd.f32 0.0, %v952
    %v954 = vpop.f32.mrb[0].mxu0
    %955 = vdwg.mxu0
    %v956 = vadd.f32 %v879, %v953
    %v957 = vxor.u32 %v956, 2147483648
    %v958 = vmul.f32 %v957, 1.442695
    %v959 = vpow.pop %v958
    %v960 = vadd.f32 %v959, 1.0
    %v961 = vrcp.pop %v960
    %v962 = vmul.f32 1.0, %v961
    %v963 = vtanh.pop %v956
    %v964 = vmul.f32 %v962, %v865
    %966 = vrot.lane.b32.xlu0 %v963, 64
    %v967 = vpop.permute.xlu0 %966
    %v969 = vmul.f32 %v962, %v967
    %971 = vrot.lane.b32.xlu0 %v969, 32
    %v972 = vpop.permute.xlu0 %971
    %v974 = vadd.f32 %v964, %v972
    %v975 = vtanh.pop %v974
    %977 = vrot.lane.b32.xlu0 %v975, 64
    %v978 = vpop.permute.xlu0 %977
    %v980 = vmul.f32 %v962, %v978
    %982 = vrot.lane.b32.xlu0 %v980, 32
    %v983 = vpop.permute.xlu0 %982
    %s985 = scalar_lea.vmem [#allocation2], 40
    %986 = vst.msk [vmem:[%s985] sm:$0xff] %vm334, %v983
    %s987 = scalar_lea.vmem [#allocation3], 48
    %v988 = vld [vmem:[%s987] sm:$0xff]
    %v989 = vld [vmem:[#allocation14] sm:$0xff]
    %v990 = vld [vmem:[#allocation14 + $0x8] sm:$0xff]
    %v991 = vld [vmem:[#allocation14 + $0x10] sm:$0xff]
    %v992 = vld [vmem:[#allocation14 + $0x18] sm:$0xff]
    %v993 = vsel %vm334, %v983, 0
    %995 = vmatprep.subr.mxu0 0.0
    %996 = vmatpush1.msra.mxu0 %v989
    %997 = vmatprep.subr.mxu0 0.0
    %998 = vmatpush1.msra.mxu0 %v990
    %999 = vmatprep.subr.mxu0 0.0
    %1000 = vmatpush1.msra.mxu0 %v991
    %1001 = vmatprep.subr.mxu0 0.0
    %1002 = vmatpush1.msra.mxu0 %v992
    %1003 = vmatprep.subr.mxu0 0.0
    %1004 = vmatpush1.msra.mxu0 0.0
    %1005 = vmatprep.subr.mxu0 0.0
    %1006 = vmatpush1.msra.mxu0 0.0
    %1007 = vmatprep.subr.mxu0 0.0
    %1008 = vmatpush1.msra.mxu0 0.0
    %1009 = vmatprep.subr.mxu0 0.0
    %1010 = vmatpush1.msra.mxu0 0.0
    %1011 = vmatprep.subr.mxu0 0.0
    %1012 = vmatpush1.msra.mxu0 0.0
    %1013 = vmatprep.subr.mxu0 0.0
    %1014 = vmatpush1.msra.mxu0 0.0
    %1015 = vmatprep.subr.mxu0 0.0
    %1016 = vmatpush1.msra.mxu0 0.0
    %1017 = vmatprep.subr.mxu0 0.0
    %1018 = vmatpush1.msra.mxu0 0.0
    %1019 = vmatprep.subr.mxu0 0.0
    %1020 = vmatpush1.msra.mxu0 0.0
    %1021 = vmatprep.subr.mxu0 0.0
    %1022 = vmatpush1.msra.mxu0 0.0
    %1023 = vmatprep.subr.mxu0 0.0
    %1024 = vmatpush1.msra.mxu0 0.0
    %1025 = vmatprep.subr.mxu0 0.0
    %1026 = vmatpush1.msra.mxu0 0.0
    %1027 = vmatprep.subr.mxu0 0.0
    %1028 = vmatpush1.msra.mxu0 0.0
    %1029 = vmatprep.subr.mxu0 0.0
    %1030 = vmatpush1.msra.mxu0 0.0
    %1031 = vmatprep.subr.mxu0 0.0
    %1032 = vmatpush1.msra.mxu0 0.0
    %1033 = vmatprep.subr.mxu0 0.0
    %1034 = vmatpush1.msra.mxu0 0.0
    %1035 = vmatprep.subr.mxu0 0.0
    %1036 = vmatpush1.msra.mxu0 0.0
    %1037 = vmatprep.subr.mxu0 0.0
    %1038 = vmatpush1.msra.mxu0 0.0
    %1039 = vmatprep.subr.mxu0 0.0
    %1040 = vmatpush1.msra.mxu0 0.0
    %1041 = vmatprep.subr.mxu0 0.0
    %1042 = vmatpush1.msra.mxu0 0.0
    %1043 = vmatprep.subr.mxu0 0.0
    %1044 = vmatpush1.msra.mxu0 0.0
    %1045 = vmatprep.subr.mxu0 0.0
    %1046 = vmatpush1.msra.mxu0 0.0
    %1047 = vmatprep.subr.mxu0 0.0
    %1048 = vmatpush1.msra.mxu0 0.0
    %1049 = vmatprep.subr.mxu0 0.0
    %1050 = vmatpush1.msra.mxu0 0.0
    %1051 = vmatprep.subr.mxu0 0.0
    %1052 = vmatpush1.msra.mxu0 0.0
    %1053 = vmatprep.subr.mxu0 0.0
    %1054 = vmatpush1.msra.mxu0 0.0
    %1055 = vmatprep.subr.mxu0 0.0
    %1056 = vmatpush1.msra.mxu0 0.0
    %1057 = vmatprep.subr.mxu0 0.0
    %1058 = vmatpush1.msra.mxu0 0.0
    %1059 = vmatprep.mubr.f32.mxu0 0.0
    %1060 = vmatmul.mubr.f32.gmra.mrb[0].mxu0 %v993
    %v1061 = vpop.f32.mrb[0].mxu0
    %v1062 = vadd.f32 0.0, %v1061
    %v1063 = vpop.f32.mrb[0].mxu0
    %1064 = vdwg.mxu0
    %v1065 = vadd.f32 %v988, %v1062
    %v1066 = vxor.u32 %v1065, 2147483648
    %v1067 = vmul.f32 %v1066, 1.442695
    %v1068 = vpow.pop %v1067
    %v1069 = vadd.f32 %v1068, 1.0
    %v1070 = vrcp.pop %v1069
    %v1071 = vmul.f32 1.0, %v1070
    %v1072 = vtanh.pop %v1065
    %v1073 = vmul.f32 %v1071, %v974
    %1075 = vrot.lane.b32.xlu0 %v1072, 64
    %v1076 = vpop.permute.xlu0 %1075
    %v1078 = vmul.f32 %v1071, %v1076
    %1080 = vrot.lane.b32.xlu0 %v1078, 32
    %v1081 = vpop.permute.xlu0 %1080
    %v1083 = vadd.f32 %v1073, %v1081
    %v1084 = vtanh.pop %v1083
    %1086 = vrot.lane.b32.xlu0 %v1084, 64
    %v1087 = vpop.permute.xlu0 %1086
    %v1089 = vmul.f32 %v1071, %v1087
    %1091 = vrot.lane.b32.xlu0 %v1089, 32
    %v1092 = vpop.permute.xlu0 %1091
    %s1094 = scalar_lea.vmem [#allocation2], 48
    %1095 = vst.msk [vmem:[%s1094] sm:$0xff] %vm334, %v1092
    %s1096 = scalar_lea.vmem [#allocation3], 56
    %v1097 = vld [vmem:[%s1096] sm:$0xff]
    %v1098 = vld [vmem:[#allocation14] sm:$0xff]
    %v1099 = vld [vmem:[#allocation14 + $0x8] sm:$0xff]
    %v1100 = vld [vmem:[#allocation14 + $0x10] sm:$0xff]
    %v1101 = vld [vmem:[#allocation14 + $0x18] sm:$0xff]
    %v1102 = vsel %vm334, %v1092, 0
    %1104 = vmatprep.subr.mxu0 0.0
    %1105 = vmatpush1.msra.mxu0 %v1098
    %1106 = vmatprep.subr.mxu0 0.0
    %1107 = vmatpush1.msra.mxu0 %v1099
    %1108 = vmatprep.subr.mxu0 0.0
    %1109 = vmatpush1.msra.mxu0 %v1100
    %1110 = vmatprep.subr.mxu0 0.0
    %1111 = vmatpush1.msra.mxu0 %v1101
    %1112 = vmatprep.subr.mxu0 0.0
    %1113 = vmatpush1.msra.mxu0 0.0
    %1114 = vmatprep.subr.mxu0 0.0
    %1115 = vmatpush1.msra.mxu0 0.0
    %1116 = vmatprep.subr.mxu0 0.0
    %1117 = vmatpush1.msra.mxu0 0.0
    %1118 = vmatprep.subr.mxu0 0.0
    %1119 = vmatpush1.msra.mxu0 0.0
    %1120 = vmatprep.subr.mxu0 0.0
    %1121 = vmatpush1.msra.mxu0 0.0
    %1122 = vmatprep.subr.mxu0 0.0
    %1123 = vmatpush1.msra.mxu0 0.0
    %1124 = vmatprep.subr.mxu0 0.0
    %1125 = vmatpush1.msra.mxu0 0.0
    %1126 = vmatprep.subr.mxu0 0.0
    %1127 = vmatpush1.msra.mxu0 0.0
    %1128 = vmatprep.subr.mxu0 0.0
    %1129 = vmatpush1.msra.mxu0 0.0
    %1130 = vmatprep.subr.mxu0 0.0
    %1131 = vmatpush1.msra.mxu0 0.0
    %1132 = vmatprep.subr.mxu0 0.0
    %1133 = vmatpush1.msra.mxu0 0.0
    %1134 = vmatprep.subr.mxu0 0.0
    %1135 = vmatpush1.msra.mxu0 0.0
    %1136 = vmatprep.subr.mxu0 0.0
    %1137 = vmatpush1.msra.mxu0 0.0
    %1138 = vmatprep.subr.mxu0 0.0
    %1139 = vmatpush1.msra.mxu0 0.0
    %1140 = vmatprep.subr.mxu0 0.0
    %1141 = vmatpush1.msra.mxu0 0.0
    %1142 = vmatprep.subr.mxu0 0.0
    %1143 = vmatpush1.msra.mxu0 0.0
    %1144 = vmatprep.subr.mxu0 0.0
    %1145 = vmatpush1.msra.mxu0 0.0
    %1146 = vmatprep.subr.mxu0 0.0
    %1147 = vmatpush1.msra.mxu0 0.0
    %1148 = vmatprep.subr.mxu0 0.0
    %1149 = vmatpush1.msra.mxu0 0.0
    %1150 = vmatprep.subr.mxu0 0.0
    %1151 = vmatpush1.msra.mxu0 0.0
    %1152 = vmatprep.subr.mxu0 0.0
    %1153 = vmatpush1.msra.mxu0 0.0
    %1154 = vmatprep.subr.mxu0 0.0
    %1155 = vmatpush1.msra.mxu0 0.0
    %1156 = vmatprep.subr.mxu0 0.0
    %1157 = vmatpush1.msra.mxu0 0.0
    %1158 = vmatprep.subr.mxu0 0.0
    %1159 = vmatpush1.msra.mxu0 0.0
    %1160 = vmatprep.subr.mxu0 0.0
    %1161 = vmatpush1.msra.mxu0 0.0
    %1162 = vmatprep.subr.mxu0 0.0
    %1163 = vmatpush1.msra.mxu0 0.0
    %1164 = vmatprep.subr.mxu0 0.0
    %1165 = vmatpush1.msra.mxu0 0.0
    %1166 = vmatprep.subr.mxu0 0.0
    %1167 = vmatpush1.msra.mxu0 0.0
    %1168 = vmatprep.mubr.f32.mxu0 0.0
    %1169 = vmatmul.mubr.f32.gmra.mrb[0].mxu0 %v1102
    %v1170 = vpop.f32.mrb[0].mxu0
    %v1171 = vadd.f32 0.0, %v1170
    %v1172 = vpop.f32.mrb[0].mxu0
    %1173 = vdwg.mxu0
    %v1174 = vadd.f32 %v1097, %v1171
    %v1175 = vxor.u32 %v1174, 2147483648
    %v1176 = vmul.f32 %v1175, 1.442695
    %v1177 = vpow.pop %v1176
    %v1178 = vadd.f32 %v1177, 1.0
    %v1179 = vrcp.pop %v1178
    %v1180 = vmul.f32 1.0, %v1179
    %v1181 = vtanh.pop %v1174
    %v1182 = vmul.f32 %v1180, %v1083
    %1184 = vrot.lane.b32.xlu0 %v1181, 64
    %v1185 = vpop.permute.xlu0 %1184
    %v1187 = vmul.f32 %v1180, %v1185
    %1189 = vrot.lane.b32.xlu0 %v1187, 32
    %v1190 = vpop.permute.xlu0 %1189
    %v1192 = vadd.f32 %v1182, %v1190
    %v1193 = vtanh.pop %v1192
    %1195 = vrot.lane.b32.xlu0 %v1193, 64
    %v1196 = vpop.permute.xlu0 %1195
    %v1198 = vmul.f32 %v1180, %v1196
    %1200 = vrot.lane.b32.xlu0 %v1198, 32
    %v1201 = vpop.permute.xlu0 %1200
    %s1203 = scalar_lea.vmem [#allocation2], 56
    %1204 = vst.msk [vmem:[%s1203] sm:$0xff] %vm334, %v1201
    %1205 = vst.msk [vmem:[#allocation23] sm:$0xff] %vm334, %v1201
    %1207 = vrot.lane.b32.xlu0 %v1192, 96
    %v1208 = vpop.permute.xlu0 %1207
    %1210 = vst.msk [vmem:[#allocation25] sm:$0xff] %vm334, %v1208
    %v1211 = vld [vmem:[#allocation2] sm:$0xff]
    %v1212 = vld [vmem:[#allocation2 + $0x8] sm:$0xff]
    %v1213 = vld [vmem:[#allocation2 + $0x10] sm:$0xff]
    %v1214 = vld [vmem:[#allocation2 + $0x18] sm:$0xff]
    %v1215 = vld [vmem:[#allocation2 + $0x20] sm:$0xff]
    %v1216 = vld [vmem:[#allocation2 + $0x28] sm:$0xff]
    %v1217 = vld [vmem:[#allocation2 + $0x30] sm:$0xff]
    %v1218 = vld [vmem:[#allocation2 + $0x38] sm:$0xff]
    %v1219 = vld [vmem:[#allocation13] sm:$0xff]
    %v1220 = vld [vmem:[#allocation13 + $0x8] sm:$0xff]
    %v1221 = vld [vmem:[#allocation13 + $0x10] sm:$0xff]
    %v1222 = vld [vmem:[#allocation13 + $0x18] sm:$0xff]
    %v1223 = vld [vmem:[#allocation19] sm:$0x1]
    %v1225 = vlaneseq
    %v1226 = vshrl.u32 %v1225, 7
    %v1227 = vsub.s32 0, %v1226
    %v1228 = vrot.slane %v1223, %v1227
    %v1231 = vsel %vm334, %v1211, 0
    %v1234 = vsel %vm334, %v1212, 0
    %v1237 = vsel %vm334, %v1213, 0
    %v1240 = vsel %vm334, %v1214, 0
    %v1243 = vsel %vm334, %v1215, 0
    %v1246 = vsel %vm334, %v1216, 0
    %v1249 = vsel %vm334, %v1217, 0
    %v1252 = vsel %vm334, %v1218, 0
    %1254 = vmatprep.subr.mxu0 0.0
    %1255 = vmatpush1.msra.mxu0 %v1219
    %1256 = vmatprep.subr.mxu0 0.0
    %1257 = vmatpush1.msra.mxu0 %v1220
    %1258 = vmatprep.subr.mxu0 0.0
    %1259 = vmatpush1.msra.mxu0 %v1221
    %1260 = vmatprep.subr.mxu0 0.0
    %1261 = vmatpush1.msra.mxu0 %v1222
    %1262 = vmatprep.subr.mxu0 0.0
    %1263 = vmatpush1.msra.mxu0 0.0
    %1264 = vmatprep.subr.mxu0 0.0
    %1265 = vmatpush1.msra.mxu0 0.0
    %1266 = vmatprep.subr.mxu0 0.0
    %1267 = vmatpush1.msra.mxu0 0.0
    %1268 = vmatprep.subr.mxu0 0.0
    %1269 = vmatpush1.msra.mxu0 0.0
    %1270 = vmatprep.subr.mxu0 0.0
    %1271 = vmatpush1.msra.mxu0 0.0
    %1272 = vmatprep.subr.mxu0 0.0
    %1273 = vmatpush1.msra.mxu0 0.0
    %1274 = vmatprep.subr.mxu0 0.0
    %1275 = vmatpush1.msra.mxu0 0.0
    %1276 = vmatprep.subr.mxu0 0.0
    %1277 = vmatpush1.msra.mxu0 0.0
    %1278 = vmatprep.subr.mxu0 0.0
    %1279 = vmatpush1.msra.mxu0 0.0
    %1280 = vmatprep.subr.mxu0 0.0
    %1281 = vmatpush1.msra.mxu0 0.0
    %1282 = vmatprep.subr.mxu0 0.0
    %1283 = vmatpush1.msra.mxu0 0.0
    %1284 = vmatprep.subr.mxu0 0.0
    %1285 = vmatpush1.msra.mxu0 0.0
    %1286 = vmatprep.subr.mxu0 0.0
    %1287 = vmatpush1.msra.mxu0 0.0
    %1288 = vmatprep.subr.mxu0 0.0
    %1289 = vmatpush1.msra.mxu0 0.0
    %1290 = vmatprep.subr.mxu0 0.0
    %1291 = vmatpush1.msra.mxu0 0.0
    %1292 = vmatprep.subr.mxu0 0.0
    %1293 = vmatpush1.msra.mxu0 0.0
    %1294 = vmatprep.subr.mxu0 0.0
    %1295 = vmatpush1.msra.mxu0 0.0
    %1296 = vmatprep.subr.mxu0 0.0
    %1297 = vmatpush1.msra.mxu0 0.0
    %1298 = vmatprep.subr.mxu0 0.0
    %1299 = vmatpush1.msra.mxu0 0.0
    %1300 = vmatprep.subr.mxu0 0.0
    %1301 = vmatpush1.msra.mxu0 0.0
    %1302 = vmatprep.subr.mxu0 0.0
    %1303 = vmatpush1.msra.mxu0 0.0
    %1304 = vmatprep.subr.mxu0 0.0
    %1305 = vmatpush1.msra.mxu0 0.0
    %1306 = vmatprep.subr.mxu0 0.0
    %1307 = vmatpush1.msra.mxu0 0.0
    %1308 = vmatprep.subr.mxu0 0.0
    %1309 = vmatpush1.msra.mxu0 0.0
    %1310 = vmatprep.subr.mxu0 0.0
    %1311 = vmatpush1.msra.mxu0 0.0
    %1312 = vmatprep.subr.mxu0 0.0
    %1313 = vmatpush1.msra.mxu0 0.0
    %1314 = vmatprep.subr.mxu0 0.0
    %1315 = vmatpush1.msra.mxu0 0.0
    %1316 = vmatprep.subr.mxu0 0.0
    %1317 = vmatpush1.msra.mxu0 0.0
    %1318 = vmatprep.mubr.f32.mxu0 0.0
    %1319 = vmatmul.mubr.f32.gmra.mrb[0].mxu0 %v1231
    %v1320 = vpop.f32.mrb[0].mxu0
    %v1321 = vadd.f32 %v1228, %v1320
    %v1322 = vpop.f32.mrb[0].mxu0
    %1323 = vmatprep.mubr.f32.mxu0 0.0
    %1324 = vmatmul.mubr.f32.gmra.mrb[0].mxu0 %v1234
    %v1325 = vpop.f32.mrb[0].mxu0
    %v1326 = vadd.f32 %v1228, %v1325
    %v1327 = vpop.f32.mrb[0].mxu0
    %1328 = vmatprep.mubr.f32.mxu0 0.0
    %1329 = vmatmul.mubr.f32.gmra.mrb[0].mxu0 %v1237
    %v1330 = vpop.f32.mrb[0].mxu0
    %v1331 = vadd.f32 %v1228, %v1330
    %v1332 = vpop.f32.mrb[0].mxu0
    %1333 = vmatprep.mubr.f32.mxu0 0.0
    %1334 = vmatmul.mubr.f32.gmra.mrb[0].mxu0 %v1240
    %v1335 = vpop.f32.mrb[0].mxu0
    %v1336 = vadd.f32 %v1228, %v1335
    %v1337 = vpop.f32.mrb[0].mxu0
    %1338 = vmatprep.mubr.f32.mxu0 0.0
    %1339 = vmatmul.mubr.f32.gmra.mrb[0].mxu0 %v1243
    %v1340 = vpop.f32.mrb[0].mxu0
    %v1341 = vadd.f32 %v1228, %v1340
    %v1342 = vpop.f32.mrb[0].mxu0
    %1343 = vmatprep.mubr.f32.mxu0 0.0
    %1344 = vmatmul.mubr.f32.gmra.mrb[0].mxu0 %v1246
    %v1345 = vpop.f32.mrb[0].mxu0
    %v1346 = vadd.f32 %v1228, %v1345
    %v1347 = vpop.f32.mrb[0].mxu0
    %1348 = vmatprep.mubr.f32.mxu0 0.0
    %1349 = vmatmul.mubr.f32.gmra.mrb[0].mxu0 %v1249
    %v1350 = vpop.f32.mrb[0].mxu0
    %v1351 = vadd.f32 %v1228, %v1350
    %v1352 = vpop.f32.mrb[0].mxu0
    %1353 = vmatprep.mubr.f32.mxu0 0.0
    %1354 = vmatmul.mubr.f32.gmra.mrb[0].mxu0 %v1252
    %v1355 = vpop.f32.mrb[0].mxu0
    %v1356 = vadd.f32 %v1228, %v1355
    %v1357 = vpop.f32.mrb[0].mxu0
    %1358 = vdwg.mxu0
    %1359 = vst [vmem:[#allocation3] sm:$0xff] %v1321
    %1360 = vst [vmem:[#allocation3 + $0x8] sm:$0xff] %v1326
    %1361 = vst [vmem:[#allocation3 + $0x10] sm:$0xff] %v1331
    %1362 = vst [vmem:[#allocation3 + $0x18] sm:$0xff] %v1336
    %1363 = vst [vmem:[#allocation3 + $0x20] sm:$0xff] %v1341
    %1364 = vst [vmem:[#allocation3 + $0x28] sm:$0xff] %v1346
    %1365 = vst [vmem:[#allocation3 + $0x30] sm:$0xff] %v1351
    %1366 = vst [vmem:[#allocation3 + $0x38] sm:$0xff] %v1356
    %s1367 = scalar_lea.vmem [#allocation8], 8
    %v1368 = vld [vmem:[%s1367] sm:$0xff]
    %s1369 = scalar_lea.vmem [#allocation10], 8
    %v1370 = vld [vmem:[%s1369] sm:$0xff]
    %v1371 = vld [vmem:[#allocation3] sm:$0xff]
    %v1372 = vld [vmem:[#allocation16] sm:$0xff]
    %v1373 = vld [vmem:[#allocation16 + $0x8] sm:$0xff]
    %v1374 = vld [vmem:[#allocation16 + $0x10] sm:$0xff]
    %v1375 = vld [vmem:[#allocation16 + $0x18] sm:$0xff]
    %v1377 = vsel %vm334, %v1368, 0
    %1379 = vmatprep.subr.mxu0 0.0
    %1380 = vmatpush1.msra.mxu0 %v1372
    %1381 = vmatprep.subr.mxu0 0.0
    %1382 = vmatpush1.msra.mxu0 %v1373
    %1383 = vmatprep.subr.mxu0 0.0
    %1384 = vmatpush1.msra.mxu0 %v1374
    %1385 = vmatprep.subr.mxu0 0.0
    %1386 = vmatpush1.msra.mxu0 %v1375
    %1387 = vmatprep.subr.mxu0 0.0
    %1388 = vmatpush1.msra.mxu0 0.0
    %1389 = vmatprep.subr.mxu0 0.0
    %1390 = vmatpush1.msra.mxu0 0.0
    %1391 = vmatprep.subr.mxu0 0.0
    %1392 = vmatpush1.msra.mxu0 0.0
    %1393 = vmatprep.subr.mxu0 0.0
    %1394 = vmatpush1.msra.mxu0 0.0
    %1395 = vmatprep.subr.mxu0 0.0
    %1396 = vmatpush1.msra.mxu0 0.0
    %1397 = vmatprep.subr.mxu0 0.0
    %1398 = vmatpush1.msra.mxu0 0.0
    %1399 = vmatprep.subr.mxu0 0.0
    %1400 = vmatpush1.msra.mxu0 0.0
    %1401 = vmatprep.subr.mxu0 0.0
    %1402 = vmatpush1.msra.mxu0 0.0
    %1403 = vmatprep.subr.mxu0 0.0
    %1404 = vmatpush1.msra.mxu0 0.0
    %1405 = vmatprep.subr.mxu0 0.0
    %1406 = vmatpush1.msra.mxu0 0.0
    %1407 = vmatprep.subr.mxu0 0.0
    %1408 = vmatpush1.msra.mxu0 0.0
    %1409 = vmatprep.subr.mxu0 0.0
    %1410 = vmatpush1.msra.mxu0 0.0
    %1411 = vmatprep.subr.mxu0 0.0
    %1412 = vmatpush1.msra.mxu0 0.0
    %1413 = vmatprep.subr.mxu0 0.0
    %1414 = vmatpush1.msra.mxu0 0.0
    %1415 = vmatprep.subr.mxu0 0.0
    %1416 = vmatpush1.msra.mxu0 0.0
    %1417 = vmatprep.subr.mxu0 0.0
    %1418 = vmatpush1.msra.mxu0 0.0
    %1419 = vmatprep.subr.mxu0 0.0
    %1420 = vmatpush1.msra.mxu0 0.0
    %1421 = vmatprep.subr.mxu0 0.0
    %1422 = vmatpush1.msra.mxu0 0.0
    %1423 = vmatprep.subr.mxu0 0.0
    %1424 = vmatpush1.msra.mxu0 0.0
    %1425 = vmatprep.subr.mxu0 0.0
    %1426 = vmatpush1.msra.mxu0 0.0
    %1427 = vmatprep.subr.mxu0 0.0
    %1428 = vmatpush1.msra.mxu0 0.0
    %1429 = vmatprep.subr.mxu0 0.0
    %1430 = vmatpush1.msra.mxu0 0.0
    %1431 = vmatprep.subr.mxu0 0.0
    %1432 = vmatpush1.msra.mxu0 0.0
    %1433 = vmatprep.subr.mxu0 0.0
    %1434 = vmatpush1.msra.mxu0 0.0
    %1435 = vmatprep.subr.mxu0 0.0
    %1436 = vmatpush1.msra.mxu0 0.0
    %1437 = vmatprep.subr.mxu0 0.0
    %1438 = vmatpush1.msra.mxu0 0.0
    %1439 = vmatprep.subr.mxu0 0.0
    %1440 = vmatpush1.msra.mxu0 0.0
    %1441 = vmatprep.subr.mxu0 0.0
    %1442 = vmatpush1.msra.mxu0 0.0
    %1443 = vmatprep.mubr.f32.mxu0 0.0
    %1444 = vmatmul.mubr.f32.gmra.mrb[0].mxu0 %v1377
    %v1445 = vpop.f32.mrb[0].mxu0
    %v1446 = vadd.f32 0.0, %v1445
    %v1447 = vpop.f32.mrb[0].mxu0
    %1448 = vdwg.mxu0
    %v1449 = vadd.f32 %v1371, %v1446
    %v1450 = vxor.u32 %v1449, 2147483648
    %v1451 = vmul.f32 %v1450, 1.442695
    %v1452 = vpow.pop %v1451
    %v1453 = vadd.f32 %v1452, 1.0
    %v1454 = vrcp.pop %v1453
    %v1455 = vmul.f32 1.0, %v1454
    %v1456 = vtanh.pop %v1449
    %1458 = vrot.lane.b32.xlu0 %v1370, 32
    %v1459 = vpop.permute.xlu0 %1458
    %v1461 = vmul.f32 %v1455, %v1459
    %1463 = vrot.lane.b32.xlu0 %v1456, 64
    %v1464 = vpop.permute.xlu0 %1463
    %v1466 = vmul.f32 %v1455, %v1464
    %1468 = vrot.lane.b32.xlu0 %v1466, 32
    %v1469 = vpop.permute.xlu0 %1468
    %v1471 = vadd.f32 %v1461, %v1469
    %v1472 = vtanh.pop %v1471
    %1474 = vrot.lane.b32.xlu0 %v1472, 64
    %v1475 = vpop.permute.xlu0 %1474
    %v1477 = vmul.f32 %v1455, %v1475
    %v1478 = vld [vmem:[%s442] sm:$0xff]
    %1480 = vrot.lane.b32.xlu0 %v1477, 32
    %v1481 = vpop.permute.xlu0 %1480
    %v1482 = vsel %vm334, %v1481, 0
    %1484 = vmatprep.subr.mxu0 0.0
    %1485 = vmatpush1.msra.mxu0 %v1372
    %1486 = vmatprep.subr.mxu0 0.0
    %1487 = vmatpush1.msra.mxu0 %v1373
    %1488 = vmatprep.subr.mxu0 0.0
    %1489 = vmatpush1.msra.mxu0 %v1374
    %1490 = vmatprep.subr.mxu0 0.0
    %1491 = vmatpush1.msra.mxu0 %v1375
    %1492 = vmatprep.subr.mxu0 0.0
    %1493 = vmatpush1.msra.mxu0 0.0
    %1494 = vmatprep.subr.mxu0 0.0
    %1495 = vmatpush1.msra.mxu0 0.0
    %1496 = vmatprep.subr.mxu0 0.0
    %1497 = vmatpush1.msra.mxu0 0.0
    %1498 = vmatprep.subr.mxu0 0.0
    %1499 = vmatpush1.msra.mxu0 0.0
    %1500 = vmatprep.subr.mxu0 0.0
    %1501 = vmatpush1.msra.mxu0 0.0
    %1502 = vmatprep.subr.mxu0 0.0
    %1503 = vmatpush1.msra.mxu0 0.0
    %1504 = vmatprep.subr.mxu0 0.0
    %1505 = vmatpush1.msra.mxu0 0.0
    %1506 = vmatprep.subr.mxu0 0.0
    %1507 = vmatpush1.msra.mxu0 0.0
    %1508 = vmatprep.subr.mxu0 0.0
    %1509 = vmatpush1.msra.mxu0 0.0
    %1510 = vmatprep.subr.mxu0 0.0
    %1511 = vmatpush1.msra.mxu0 0.0
    %1512 = vmatprep.subr.mxu0 0.0
    %1513 = vmatpush1.msra.mxu0 0.0
    %1514 = vmatprep.subr.mxu0 0.0
    %1515 = vmatpush1.msra.mxu0 0.0
    %1516 = vmatprep.subr.mxu0 0.0
    %1517 = vmatpush1.msra.mxu0 0.0
    %1518 = vmatprep.subr.mxu0 0.0
    %1519 = vmatpush1.msra.mxu0 0.0
    %1520 = vmatprep.subr.mxu0 0.0
    %1521 = vmatpush1.msra.mxu0 0.0
    %1522 = vmatprep.subr.mxu0 0.0
    %1523 = vmatpush1.msra.mxu0 0.0
    %1524 = vmatprep.subr.mxu0 0.0
    %1525 = vmatpush1.msra.mxu0 0.0
    %1526 = vmatprep.subr.mxu0 0.0
    %1527 = vmatpush1.msra.mxu0 0.0
    %1528 = vmatprep.subr.mxu0 0.0
    %1529 = vmatpush1.msra.mxu0 0.0
    %1530 = vmatprep.subr.mxu0 0.0
    %1531 = vmatpush1.msra.mxu0 0.0
    %1532 = vmatprep.subr.mxu0 0.0
    %1533 = vmatpush1.msra.mxu0 0.0
    %1534 = vmatprep.subr.mxu0 0.0
    %1535 = vmatpush1.msra.mxu0 0.0
    %1536 = vmatprep.subr.mxu0 0.0
    %1537 = vmatpush1.msra.mxu0 0.0
    %1538 = vmatprep.subr.mxu0 0.0
    %1539 = vmatpush1.msra.mxu0 0.0
    %1540 = vmatprep.subr.mxu0 0.0
    %1541 = vmatpush1.msra.mxu0 0.0
    %1542 = vmatprep.subr.mxu0 0.0
    %1543 = vmatpush1.msra.mxu0 0.0
    %1544 = vmatprep.subr.mxu0 0.0
    %1545 = vmatpush1.msra.mxu0 0.0
    %1546 = vmatprep.subr.mxu0 0.0
    %1547 = vmatpush1.msra.mxu0 0.0
    %1548 = vmatprep.mubr.f32.mxu0 0.0
    %1549 = vmatmul.mubr.f32.gmra.mrb[0].mxu0 %v1482
    %v1550 = vpop.f32.mrb[0].mxu0
    %v1551 = vadd.f32 0.0, %v1550
    %v1552 = vpop.f32.mrb[0].mxu0
    %1553 = vdwg.mxu0
    %v1554 = vadd.f32 %v1478, %v1551
    %v1555 = vxor.u32 %v1554, 2147483648
    %v1556 = vmul.f32 %v1555, 1.442695
    %v1557 = vpow.pop %v1556
    %v1558 = vadd.f32 %v1557, 1.0
    %v1559 = vrcp.pop %v1558
    %v1560 = vmul.f32 1.0, %v1559
    %v1561 = vtanh.pop %v1554
    %v1562 = vmul.f32 %v1560, %v1471
    %1564 = vrot.lane.b32.xlu0 %v1561, 64
    %v1565 = vpop.permute.xlu0 %1564
    %v1567 = vmul.f32 %v1560, %v1565
    %1569 = vrot.lane.b32.xlu0 %v1567, 32
    %v1570 = vpop.permute.xlu0 %1569
    %v1572 = vadd.f32 %v1562, %v1570
    %v1573 = vtanh.pop %v1572
    %1575 = vrot.lane.b32.xlu0 %v1573, 64
    %v1576 = vpop.permute.xlu0 %1575
    %v1578 = vmul.f32 %v1560, %v1576
    %v1579 = vld [vmem:[%s551] sm:$0xff]
    %1581 = vrot.lane.b32.xlu0 %v1578, 32
    %v1582 = vpop.permute.xlu0 %1581
    %v1583 = vsel %vm334, %v1582, 0
    %1585 = vmatprep.subr.mxu0 0.0
    %1586 = vmatpush1.msra.mxu0 %v1372
    %1587 = vmatprep.subr.mxu0 0.0
    %1588 = vmatpush1.msra.mxu0 %v1373
    %1589 = vmatprep.subr.mxu0 0.0
    %1590 = vmatpush1.msra.mxu0 %v1374
    %1591 = vmatprep.subr.mxu0 0.0
    %1592 = vmatpush1.msra.mxu0 %v1375
    %1593 = vmatprep.subr.mxu0 0.0
    %1594 = vmatpush1.msra.mxu0 0.0
    %1595 = vmatprep.subr.mxu0 0.0
    %1596 = vmatpush1.msra.mxu0 0.0
    %1597 = vmatprep.subr.mxu0 0.0
    %1598 = vmatpush1.msra.mxu0 0.0
    %1599 = vmatprep.subr.mxu0 0.0
    %1600 = vmatpush1.msra.mxu0 0.0
    %1601 = vmatprep.subr.mxu0 0.0
    %1602 = vmatpush1.msra.mxu0 0.0
    %1603 = vmatprep.subr.mxu0 0.0
    %1604 = vmatpush1.msra.mxu0 0.0
    %1605 = vmatprep.subr.mxu0 0.0
    %1606 = vmatpush1.msra.mxu0 0.0
    %1607 = vmatprep.subr.mxu0 0.0
    %1608 = vmatpush1.msra.mxu0 0.0
    %1609 = vmatprep.subr.mxu0 0.0
    %1610 = vmatpush1.msra.mxu0 0.0
    %1611 = vmatprep.subr.mxu0 0.0
    %1612 = vmatpush1.msra.mxu0 0.0
    %1613 = vmatprep.subr.mxu0 0.0
    %1614 = vmatpush1.msra.mxu0 0.0
    %1615 = vmatprep.subr.mxu0 0.0
    %1616 = vmatpush1.msra.mxu0 0.0
    %1617 = vmatprep.subr.mxu0 0.0
    %1618 = vmatpush1.msra.mxu0 0.0
    %1619 = vmatprep.subr.mxu0 0.0
    %1620 = vmatpush1.msra.mxu0 0.0
    %1621 = vmatprep.subr.mxu0 0.0
    %1622 = vmatpush1.msra.mxu0 0.0
    %1623 = vmatprep.subr.mxu0 0.0
    %1624 = vmatpush1.msra.mxu0 0.0
    %1625 = vmatprep.subr.mxu0 0.0
    %1626 = vmatpush1.msra.mxu0 0.0
    %1627 = vmatprep.subr.mxu0 0.0
    %1628 = vmatpush1.msra.mxu0 0.0
    %1629 = vmatprep.subr.mxu0 0.0
    %1630 = vmatpush1.msra.mxu0 0.0
    %1631 = vmatprep.subr.mxu0 0.0
    %1632 = vmatpush1.msra.mxu0 0.0
    %1633 = vmatprep.subr.mxu0 0.0
    %1634 = vmatpush1.msra.mxu0 0.0
    %1635 = vmatprep.subr.mxu0 0.0
    %1636 = vmatpush1.msra.mxu0 0.0
    %1637 = vmatprep.subr.mxu0 0.0
    %1638 = vmatpush1.msra.mxu0 0.0
    %1639 = vmatprep.subr.mxu0 0.0
    %1640 = vmatpush1.msra.mxu0 0.0
    %1641 = vmatprep.subr.mxu0 0.0
    %1642 = vmatpush1.msra.mxu0 0.0
    %1643 = vmatprep.subr.mxu0 0.0
    %1644 = vmatpush1.msra.mxu0 0.0
    %1645 = vmatprep.subr.mxu0 0.0
    %1646 = vmatpush1.msra.mxu0 0.0
    %1647 = vmatprep.subr.mxu0 0.0
    %1648 = vmatpush1.msra.mxu0 0.0
    %1649 = vmatprep.mubr.f32.mxu0 0.0
    %1650 = vmatmul.mubr.f32.gmra.mrb[0].mxu0 %v1583
    %v1651 = vpop.f32.mrb[0].mxu0
    %v1652 = vadd.f32 0.0, %v1651
    %v1653 = vpop.f32.mrb[0].mxu0
    %1654 = vdwg.mxu0
    %v1655 = vadd.f32 %v1579, %v1652
    %v1656 = vxor.u32 %v1655, 2147483648
    %v1657 = vmul.f32 %v1656, 1.442695
    %v1658 = vpow.pop %v1657
    %v1659 = vadd.f32 %v1658, 1.0
    %v1660 = vrcp.pop %v1659
    %v1661 = vmul.f32 1.0, %v1660
    %v1662 = vtanh.pop %v1655
    %v1663 = vmul.f32 %v1661, %v1572
    %1665 = vrot.lane.b32.xlu0 %v1662, 64
    %v1666 = vpop.permute.xlu0 %1665
    %v1668 = vmul.f32 %v1661, %v1666
    %1670 = vrot.lane.b32.xlu0 %v1668, 32
    %v1671 = vpop.permute.xlu0 %1670
    %v1673 = vadd.f32 %v1663, %v1671
    %v1674 = vtanh.pop %v1673
    %1676 = vrot.lane.b32.xlu0 %v1674, 64
    %v1677 = vpop.permute.xlu0 %1676
    %v1679 = vmul.f32 %v1661, %v1677
    %v1680 = vld [vmem:[%s660] sm:$0xff]
    %1682 = vrot.lane.b32.xlu0 %v1679, 32
    %v1683 = vpop.permute.xlu0 %1682
    %v1684 = vsel %vm334, %v1683, 0
    %1686 = vmatprep.subr.mxu0 0.0
    %1687 = vmatpush1.msra.mxu0 %v1372
    %1688 = vmatprep.subr.mxu0 0.0
    %1689 = vmatpush1.msra.mxu0 %v1373
    %1690 = vmatprep.subr.mxu0 0.0
    %1691 = vmatpush1.msra.mxu0 %v1374
    %1692 = vmatprep.subr.mxu0 0.0
    %1693 = vmatpush1.msra.mxu0 %v1375
    %1694 = vmatprep.subr.mxu0 0.0
    %1695 = vmatpush1.msra.mxu0 0.0
    %1696 = vmatprep.subr.mxu0 0.0
    %1697 = vmatpush1.msra.mxu0 0.0
    %1698 = vmatprep.subr.mxu0 0.0
    %1699 = vmatpush1.msra.mxu0 0.0
    %1700 = vmatprep.subr.mxu0 0.0
    %1701 = vmatpush1.msra.mxu0 0.0
    %1702 = vmatprep.subr.mxu0 0.0
    %1703 = vmatpush1.msra.mxu0 0.0
    %1704 = vmatprep.subr.mxu0 0.0
    %1705 = vmatpush1.msra.mxu0 0.0
    %1706 = vmatprep.subr.mxu0 0.0
    %1707 = vmatpush1.msra.mxu0 0.0
    %1708 = vmatprep.subr.mxu0 0.0
    %1709 = vmatpush1.msra.mxu0 0.0
    %1710 = vmatprep.subr.mxu0 0.0
    %1711 = vmatpush1.msra.mxu0 0.0
    %1712 = vmatprep.subr.mxu0 0.0
    %1713 = vmatpush1.msra.mxu0 0.0
    %1714 = vmatprep.subr.mxu0 0.0
    %1715 = vmatpush1.msra.mxu0 0.0
    %1716 = vmatprep.subr.mxu0 0.0
    %1717 = vmatpush1.msra.mxu0 0.0
    %1718 = vmatprep.subr.mxu0 0.0
    %1719 = vmatpush1.msra.mxu0 0.0
    %1720 = vmatprep.subr.mxu0 0.0
    %1721 = vmatpush1.msra.mxu0 0.0
    %1722 = vmatprep.subr.mxu0 0.0
    %1723 = vmatpush1.msra.mxu0 0.0
    %1724 = vmatprep.subr.mxu0 0.0
    %1725 = vmatpush1.msra.mxu0 0.0
    %1726 = vmatprep.subr.mxu0 0.0
    %1727 = vmatpush1.msra.mxu0 0.0
    %1728 = vmatprep.subr.mxu0 0.0
    %1729 = vmatpush1.msra.mxu0 0.0
    %1730 = vmatprep.subr.mxu0 0.0
    %1731 = vmatpush1.msra.mxu0 0.0
    %1732 = vmatprep.subr.mxu0 0.0
    %1733 = vmatpush1.msra.mxu0 0.0
    %1734 = vmatprep.subr.mxu0 0.0
    %1735 = vmatpush1.msra.mxu0 0.0
    %1736 = vmatprep.subr.mxu0 0.0
    %1737 = vmatpush1.msra.mxu0 0.0
    %1738 = vmatprep.subr.mxu0 0.0
    %1739 = vmatpush1.msra.mxu0 0.0
    %1740 = vmatprep.subr.mxu0 0.0
    %1741 = vmatpush1.msra.mxu0 0.0
    %1742 = vmatprep.subr.mxu0 0.0
    %1743 = vmatpush1.msra.mxu0 0.0
    %1744 = vmatprep.subr.mxu0 0.0
    %1745 = vmatpush1.msra.mxu0 0.0
    %1746 = vmatprep.subr.mxu0 0.0
    %1747 = vmatpush1.msra.mxu0 0.0
    %1748 = vmatprep.subr.mxu0 0.0
    %1749 = vmatpush1.msra.mxu0 0.0
    %1750 = vmatprep.mubr.f32.mxu0 0.0
    %1751 = vmatmul.mubr.f32.gmra.mrb[0].mxu0 %v1684
    %v1752 = vpop.f32.mrb[0].mxu0
    %v1753 = vadd.f32 0.0, %v1752
    %v1754 = vpop.f32.mrb[0].mxu0
    %1755 = vdwg.mxu0
    %v1756 = vadd.f32 %v1680, %v1753
    %v1757 = vxor.u32 %v1756, 2147483648
    %v1758 = vmul.f32 %v1757, 1.442695
    %v1759 = vpow.pop %v1758
    %v1760 = vadd.f32 %v1759, 1.0
    %v1761 = vrcp.pop %v1760
    %v1762 = vmul.f32 1.0, %v1761
    %v1763 = vtanh.pop %v1756
    %v1764 = vmul.f32 %v1762, %v1673
    %1766 = vrot.lane.b32.xlu0 %v1763, 64
    %v1767 = vpop.permute.xlu0 %1766
    %v1769 = vmul.f32 %v1762, %v1767
    %1771 = vrot.lane.b32.xlu0 %v1769, 32
    %v1772 = vpop.permute.xlu0 %1771
    %v1774 = vadd.f32 %v1764, %v1772
    %v1775 = vtanh.pop %v1774
    %1777 = vrot.lane.b32.xlu0 %v1775, 64
    %v1778 = vpop.permute.xlu0 %1777
    %v1780 = vmul.f32 %v1762, %v1778
    %v1781 = vld [vmem:[%s769] sm:$0xff]
    %1783 = vrot.lane.b32.xlu0 %v1780, 32
    %v1784 = vpop.permute.xlu0 %1783
    %v1785 = vsel %vm334, %v1784, 0
    %1787 = vmatprep.subr.mxu0 0.0
    %1788 = vmatpush1.msra.mxu0 %v1372
    %1789 = vmatprep.subr.mxu0 0.0
    %1790 = vmatpush1.msra.mxu0 %v1373
    %1791 = vmatprep.subr.mxu0 0.0
    %1792 = vmatpush1.msra.mxu0 %v1374
    %1793 = vmatprep.subr.mxu0 0.0
    %1794 = vmatpush1.msra.mxu0 %v1375
    %1795 = vmatprep.subr.mxu0 0.0
    %1796 = vmatpush1.msra.mxu0 0.0
    %1797 = vmatprep.subr.mxu0 0.0
    %1798 = vmatpush1.msra.mxu0 0.0
    %1799 = vmatprep.subr.mxu0 0.0
    %1800 = vmatpush1.msra.mxu0 0.0
    %1801 = vmatprep.subr.mxu0 0.0
    %1802 = vmatpush1.msra.mxu0 0.0
    %1803 = vmatprep.subr.mxu0 0.0
    %1804 = vmatpush1.msra.mxu0 0.0
    %1805 = vmatprep.subr.mxu0 0.0
    %1806 = vmatpush1.msra.mxu0 0.0
    %1807 = vmatprep.subr.mxu0 0.0
    %1808 = vmatpush1.msra.mxu0 0.0
    %1809 = vmatprep.subr.mxu0 0.0
    %1810 = vmatpush1.msra.mxu0 0.0
    %1811 = vmatprep.subr.mxu0 0.0
    %1812 = vmatpush1.msra.mxu0 0.0
    %1813 = vmatprep.subr.mxu0 0.0
    %1814 = vmatpush1.msra.mxu0 0.0
    %1815 = vmatprep.subr.mxu0 0.0
    %1816 = vmatpush1.msra.mxu0 0.0
    %1817 = vmatprep.subr.mxu0 0.0
    %1818 = vmatpush1.msra.mxu0 0.0
    %1819 = vmatprep.subr.mxu0 0.0
    %1820 = vmatpush1.msra.mxu0 0.0
    %1821 = vmatprep.subr.mxu0 0.0
    %1822 = vmatpush1.msra.mxu0 0.0
    %1823 = vmatprep.subr.mxu0 0.0
    %1824 = vmatpush1.msra.mxu0 0.0
    %1825 = vmatprep.subr.mxu0 0.0
    %1826 = vmatpush1.msra.mxu0 0.0
    %1827 = vmatprep.subr.mxu0 0.0
    %1828 = vmatpush1.msra.mxu0 0.0
    %1829 = vmatprep.subr.mxu0 0.0
    %1830 = vmatpush1.msra.mxu0 0.0
    %1831 = vmatprep.subr.mxu0 0.0
    %1832 = vmatpush1.msra.mxu0 0.0
    %1833 = vmatprep.subr.mxu0 0.0
    %1834 = vmatpush1.msra.mxu0 0.0
    %1835 = vmatprep.subr.mxu0 0.0
    %1836 = vmatpush1.msra.mxu0 0.0
    %1837 = vmatprep.subr.mxu0 0.0
    %1838 = vmatpush1.msra.mxu0 0.0
    %1839 = vmatprep.subr.mxu0 0.0
    %1840 = vmatpush1.msra.mxu0 0.0
    %1841 = vmatprep.subr.mxu0 0.0
    %1842 = vmatpush1.msra.mxu0 0.0
    %1843 = vmatprep.subr.mxu0 0.0
    %1844 = vmatpush1.msra.mxu0 0.0
    %1845 = vmatprep.subr.mxu0 0.0
    %1846 = vmatpush1.msra.mxu0 0.0
    %1847 = vmatprep.subr.mxu0 0.0
    %1848 = vmatpush1.msra.mxu0 0.0
    %1849 = vmatprep.subr.mxu0 0.0
    %1850 = vmatpush1.msra.mxu0 0.0
    %1851 = vmatprep.mubr.f32.mxu0 0.0
    %1852 = vmatmul.mubr.f32.gmra.mrb[0].mxu0 %v1785
    %v1853 = vpop.f32.mrb[0].mxu0
    %v1854 = vadd.f32 0.0, %v1853
    %v1855 = vpop.f32.mrb[0].mxu0
    %1856 = vdwg.mxu0
    %v1857 = vadd.f32 %v1781, %v1854
    %v1858 = vxor.u32 %v1857, 2147483648
    %v1859 = vmul.f32 %v1858, 1.442695
    %v1860 = vpow.pop %v1859
    %v1861 = vadd.f32 %v1860, 1.0
    %v1862 = vrcp.pop %v1861
    %v1863 = vmul.f32 1.0, %v1862
    %v1864 = vtanh.pop %v1857
    %v1865 = vmul.f32 %v1863, %v1774
    %1867 = vrot.lane.b32.xlu0 %v1864, 64
    %v1868 = vpop.permute.xlu0 %1867
    %v1870 = vmul.f32 %v1863, %v1868
    %1872 = vrot.lane.b32.xlu0 %v1870, 32
    %v1873 = vpop.permute.xlu0 %1872
    %v1875 = vadd.f32 %v1865, %v1873
    %v1876 = vtanh.pop %v1875
    %1878 = vrot.lane.b32.xlu0 %v1876, 64
    %v1879 = vpop.permute.xlu0 %1878
    %v1881 = vmul.f32 %v1863, %v1879
    %v1882 = vld [vmem:[%s878] sm:$0xff]
    %1884 = vrot.lane.b32.xlu0 %v1881, 32
    %v1885 = vpop.permute.xlu0 %1884
    %v1886 = vsel %vm334, %v1885, 0
    %1888 = vmatprep.subr.mxu0 0.0
    %1889 = vmatpush1.msra.mxu0 %v1372
    %1890 = vmatprep.subr.mxu0 0.0
    %1891 = vmatpush1.msra.mxu0 %v1373
    %1892 = vmatprep.subr.mxu0 0.0
    %1893 = vmatpush1.msra.mxu0 %v1374
    %1894 = vmatprep.subr.mxu0 0.0
    %1895 = vmatpush1.msra.mxu0 %v1375
    %1896 = vmatprep.subr.mxu0 0.0
    %1897 = vmatpush1.msra.mxu0 0.0
    %1898 = vmatprep.subr.mxu0 0.0
    %1899 = vmatpush1.msra.mxu0 0.0
    %1900 = vmatprep.subr.mxu0 0.0
    %1901 = vmatpush1.msra.mxu0 0.0
    %1902 = vmatprep.subr.mxu0 0.0
    %1903 = vmatpush1.msra.mxu0 0.0
    %1904 = vmatprep.subr.mxu0 0.0
    %1905 = vmatpush1.msra.mxu0 0.0
    %1906 = vmatprep.subr.mxu0 0.0
    %1907 = vmatpush1.msra.mxu0 0.0
    %1908 = vmatprep.subr.mxu0 0.0
    %1909 = vmatpush1.msra.mxu0 0.0
    %1910 = vmatprep.subr.mxu0 0.0
    %1911 = vmatpush1.msra.mxu0 0.0
    %1912 = vmatprep.subr.mxu0 0.0
    %1913 = vmatpush1.msra.mxu0 0.0
    %1914 = vmatprep.subr.mxu0 0.0
    %1915 = vmatpush1.msra.mxu0 0.0
    %1916 = vmatprep.subr.mxu0 0.0
    %1917 = vmatpush1.msra.mxu0 0.0
    %1918 = vmatprep.subr.mxu0 0.0
    %1919 = vmatpush1.msra.mxu0 0.0
    %1920 = vmatprep.subr.mxu0 0.0
    %1921 = vmatpush1.msra.mxu0 0.0
    %1922 = vmatprep.subr.mxu0 0.0
    %1923 = vmatpush1.msra.mxu0 0.0
    %1924 = vmatprep.subr.mxu0 0.0
    %1925 = vmatpush1.msra.mxu0 0.0
    %1926 = vmatprep.subr.mxu0 0.0
    %1927 = vmatpush1.msra.mxu0 0.0
    %1928 = vmatprep.subr.mxu0 0.0
    %1929 = vmatpush1.msra.mxu0 0.0
    %1930 = vmatprep.subr.mxu0 0.0
    %1931 = vmatpush1.msra.mxu0 0.0
    %1932 = vmatprep.subr.mxu0 0.0
    %1933 = vmatpush1.msra.mxu0 0.0
    %1934 = vmatprep.subr.mxu0 0.0
    %1935 = vmatpush1.msra.mxu0 0.0
    %1936 = vmatprep.subr.mxu0 0.0
    %1937 = vmatpush1.msra.mxu0 0.0
    %1938 = vmatprep.subr.mxu0 0.0
    %1939 = vmatpush1.msra.mxu0 0.0
    %1940 = vmatprep.subr.mxu0 0.0
    %1941 = vmatpush1.msra.mxu0 0.0
    %1942 = vmatprep.subr.mxu0 0.0
    %1943 = vmatpush1.msra.mxu0 0.0
    %1944 = vmatprep.subr.mxu0 0.0
    %1945 = vmatpush1.msra.mxu0 0.0
    %1946 = vmatprep.subr.mxu0 0.0
    %1947 = vmatpush1.msra.mxu0 0.0
    %1948 = vmatprep.subr.mxu0 0.0
    %1949 = vmatpush1.msra.mxu0 0.0
    %1950 = vmatprep.subr.mxu0 0.0
    %1951 = vmatpush1.msra.mxu0 0.0
    %1952 = vmatprep.mubr.f32.mxu0 0.0
    %1953 = vmatmul.mubr.f32.gmra.mrb[0].mxu0 %v1886
    %v1954 = vpop.f32.mrb[0].mxu0
    %v1955 = vadd.f32 0.0, %v1954
    %v1956 = vpop.f32.mrb[0].mxu0
    %1957 = vdwg.mxu0
    %v1958 = vadd.f32 %v1882, %v1955
    %v1959 = vxor.u32 %v1958, 2147483648
    %v1960 = vmul.f32 %v1959, 1.442695
    %v1961 = vpow.pop %v1960
    %v1962 = vadd.f32 %v1961, 1.0
    %v1963 = vrcp.pop %v1962
    %v1964 = vmul.f32 1.0, %v1963
    %v1965 = vtanh.pop %v1958
    %v1966 = vmul.f32 %v1964, %v1875
    %1968 = vrot.lane.b32.xlu0 %v1965, 64
    %v1969 = vpop.permute.xlu0 %1968
    %v1971 = vmul.f32 %v1964, %v1969
    %1973 = vrot.lane.b32.xlu0 %v1971, 32
    %v1974 = vpop.permute.xlu0 %1973
    %v1976 = vadd.f32 %v1966, %v1974
    %v1977 = vtanh.pop %v1976
    %1979 = vrot.lane.b32.xlu0 %v1977, 64
    %v1980 = vpop.permute.xlu0 %1979
    %v1982 = vmul.f32 %v1964, %v1980
    %v1983 = vld [vmem:[%s987] sm:$0xff]
    %1985 = vrot.lane.b32.xlu0 %v1982, 32
    %v1986 = vpop.permute.xlu0 %1985
    %v1987 = vsel %vm334, %v1986, 0
    %1989 = vmatprep.subr.mxu0 0.0
    %1990 = vmatpush1.msra.mxu0 %v1372
    %1991 = vmatprep.subr.mxu0 0.0
    %1992 = vmatpush1.msra.mxu0 %v1373
    %1993 = vmatprep.subr.mxu0 0.0
    %1994 = vmatpush1.msra.mxu0 %v1374
    %1995 = vmatprep.subr.mxu0 0.0
    %1996 = vmatpush1.msra.mxu0 %v1375
    %1997 = vmatprep.subr.mxu0 0.0
    %1998 = vmatpush1.msra.mxu0 0.0
    %1999 = vmatprep.subr.mxu0 0.0
    %2000 = vmatpush1.msra.mxu0 0.0
    %2001 = vmatprep.subr.mxu0 0.0
    %2002 = vmatpush1.msra.mxu0 0.0
    %2003 = vmatprep.subr.mxu0 0.0
    %2004 = vmatpush1.msra.mxu0 0.0
    %2005 = vmatprep.subr.mxu0 0.0
    %2006 = vmatpush1.msra.mxu0 0.0
    %2007 = vmatprep.subr.mxu0 0.0
    %2008 = vmatpush1.msra.mxu0 0.0
    %2009 = vmatprep.subr.mxu0 0.0
    %2010 = vmatpush1.msra.mxu0 0.0
    %2011 = vmatprep.subr.mxu0 0.0
    %2012 = vmatpush1.msra.mxu0 0.0
    %2013 = vmatprep.subr.mxu0 0.0
    %2014 = vmatpush1.msra.mxu0 0.0
    %2015 = vmatprep.subr.mxu0 0.0
    %2016 = vmatpush1.msra.mxu0 0.0
    %2017 = vmatprep.subr.mxu0 0.0
    %2018 = vmatpush1.msra.mxu0 0.0
    %2019 = vmatprep.subr.mxu0 0.0
    %2020 = vmatpush1.msra.mxu0 0.0
    %2021 = vmatprep.subr.mxu0 0.0
    %2022 = vmatpush1.msra.mxu0 0.0
    %2023 = vmatprep.subr.mxu0 0.0
    %2024 = vmatpush1.msra.mxu0 0.0
    %2025 = vmatprep.subr.mxu0 0.0
    %2026 = vmatpush1.msra.mxu0 0.0
    %2027 = vmatprep.subr.mxu0 0.0
    %2028 = vmatpush1.msra.mxu0 0.0
    %2029 = vmatprep.subr.mxu0 0.0
    %2030 = vmatpush1.msra.mxu0 0.0
    %2031 = vmatprep.subr.mxu0 0.0
    %2032 = vmatpush1.msra.mxu0 0.0
    %2033 = vmatprep.subr.mxu0 0.0
    %2034 = vmatpush1.msra.mxu0 0.0
    %2035 = vmatprep.subr.mxu0 0.0
    %2036 = vmatpush1.msra.mxu0 0.0
    %2037 = vmatprep.subr.mxu0 0.0
    %2038 = vmatpush1.msra.mxu0 0.0
    %2039 = vmatprep.subr.mxu0 0.0
    %2040 = vmatpush1.msra.mxu0 0.0
    %2041 = vmatprep.subr.mxu0 0.0
    %2042 = vmatpush1.msra.mxu0 0.0
    %2043 = vmatprep.subr.mxu0 0.0
    %2044 = vmatpush1.msra.mxu0 0.0
    %2045 = vmatprep.subr.mxu0 0.0
    %2046 = vmatpush1.msra.mxu0 0.0
    %2047 = vmatprep.subr.mxu0 0.0
    %2048 = vmatpush1.msra.mxu0 0.0
    %2049 = vmatprep.subr.mxu0 0.0
    %2050 = vmatpush1.msra.mxu0 0.0
    %2051 = vmatprep.subr.mxu0 0.0
    %2052 = vmatpush1.msra.mxu0 0.0
    %2053 = vmatprep.mubr.f32.mxu0 0.0
    %2054 = vmatmul.mubr.f32.gmra.mrb[0].mxu0 %v1987
    %v2055 = vpop.f32.mrb[0].mxu0
    %v2056 = vadd.f32 0.0, %v2055
    %v2057 = vpop.f32.mrb[0].mxu0
    %2058 = vdwg.mxu0
    %v2059 = vadd.f32 %v1983, %v2056
    %v2060 = vxor.u32 %v2059, 2147483648
    %v2061 = vmul.f32 %v2060, 1.442695
    %v2062 = vpow.pop %v2061
    %v2063 = vadd.f32 %v2062, 1.0
    %v2064 = vrcp.pop %v2063
    %v2065 = vmul.f32 1.0, %v2064
    %v2066 = vtanh.pop %v2059
    %v2067 = vmul.f32 %v2065, %v1976
    %2069 = vrot.lane.b32.xlu0 %v2066, 64
    %v2070 = vpop.permute.xlu0 %2069
    %v2072 = vmul.f32 %v2065, %v2070
    %2074 = vrot.lane.b32.xlu0 %v2072, 32
    %v2075 = vpop.permute.xlu0 %2074
    %v2077 = vadd.f32 %v2067, %v2075
    %v2078 = vtanh.pop %v2077
    %2080 = vrot.lane.b32.xlu0 %v2078, 64
    %v2081 = vpop.permute.xlu0 %2080
    %v2083 = vmul.f32 %v2065, %v2081
    %v2084 = vld [vmem:[%s1096] sm:$0xff]
    %2086 = vrot.lane.b32.xlu0 %v2083, 32
    %v2087 = vpop.permute.xlu0 %2086
    %v2088 = vsel %vm334, %v2087, 0
    %2090 = vmatprep.subr.mxu0 0.0
    %2091 = vmatpush1.msra.mxu0 %v1372
    %2092 = vmatprep.subr.mxu0 0.0
    %2093 = vmatpush1.msra.mxu0 %v1373
    %2094 = vmatprep.subr.mxu0 0.0
    %2095 = vmatpush1.msra.mxu0 %v1374
    %2096 = vmatprep.subr.mxu0 0.0
    %2097 = vmatpush1.msra.mxu0 %v1375
    %2098 = vmatprep.subr.mxu0 0.0
    %2099 = vmatpush1.msra.mxu0 0.0
    %2100 = vmatprep.subr.mxu0 0.0
    %2101 = vmatpush1.msra.mxu0 0.0
    %2102 = vmatprep.subr.mxu0 0.0
    %2103 = vmatpush1.msra.mxu0 0.0
    %2104 = vmatprep.subr.mxu0 0.0
    %2105 = vmatpush1.msra.mxu0 0.0
    %2106 = vmatprep.subr.mxu0 0.0
    %2107 = vmatpush1.msra.mxu0 0.0
    %2108 = vmatprep.subr.mxu0 0.0
    %2109 = vmatpush1.msra.mxu0 0.0
    %2110 = vmatprep.subr.mxu0 0.0
    %2111 = vmatpush1.msra.mxu0 0.0
    %2112 = vmatprep.subr.mxu0 0.0
    %2113 = vmatpush1.msra.mxu0 0.0
    %2114 = vmatprep.subr.mxu0 0.0
    %2115 = vmatpush1.msra.mxu0 0.0
    %2116 = vmatprep.subr.mxu0 0.0
    %2117 = vmatpush1.msra.mxu0 0.0
    %2118 = vmatprep.subr.mxu0 0.0
    %2119 = vmatpush1.msra.mxu0 0.0
    %2120 = vmatprep.subr.mxu0 0.0
    %2121 = vmatpush1.msra.mxu0 0.0
    %2122 = vmatprep.subr.mxu0 0.0
    %2123 = vmatpush1.msra.mxu0 0.0
    %2124 = vmatprep.subr.mxu0 0.0
    %2125 = vmatpush1.msra.mxu0 0.0
    %2126 = vmatprep.subr.mxu0 0.0
    %2127 = vmatpush1.msra.mxu0 0.0
    %2128 = vmatprep.subr.mxu0 0.0
    %2129 = vmatpush1.msra.mxu0 0.0
    %2130 = vmatprep.subr.mxu0 0.0
    %2131 = vmatpush1.msra.mxu0 0.0
    %2132 = vmatprep.subr.mxu0 0.0
    %2133 = vmatpush1.msra.mxu0 0.0
    %2134 = vmatprep.subr.mxu0 0.0
    %2135 = vmatpush1.msra.mxu0 0.0
    %2136 = vmatprep.subr.mxu0 0.0
    %2137 = vmatpush1.msra.mxu0 0.0
    %2138 = vmatprep.subr.mxu0 0.0
    %2139 = vmatpush1.msra.mxu0 0.0
    %2140 = vmatprep.subr.mxu0 0.0
    %2141 = vmatpush1.msra.mxu0 0.0
    %2142 = vmatprep.subr.mxu0 0.0
    %2143 = vmatpush1.msra.mxu0 0.0
    %2144 = vmatprep.subr.mxu0 0.0
    %2145 = vmatpush1.msra.mxu0 0.0
    %2146 = vmatprep.subr.mxu0 0.0
    %2147 = vmatpush1.msra.mxu0 0.0
    %2148 = vmatprep.subr.mxu0 0.0
    %2149 = vmatpush1.msra.mxu0 0.0
    %2150 = vmatprep.subr.mxu0 0.0
    %2151 = vmatpush1.msra.mxu0 0.0
    %2152 = vmatprep.subr.mxu0 0.0
    %2153 = vmatpush1.msra.mxu0 0.0
    %2154 = vmatprep.mubr.f32.mxu0 0.0
    %2155 = vmatmul.mubr.f32.gmra.mrb[0].mxu0 %v2088
    %v2156 = vpop.f32.mrb[0].mxu0
    %v2157 = vadd.f32 0.0, %v2156
    %v2158 = vpop.f32.mrb[0].mxu0
    %2159 = vdwg.mxu0
    %v2160 = vadd.f32 %v2084, %v2157
    %v2161 = vxor.u32 %v2160, 2147483648
    %v2162 = vmul.f32 %v2161, 1.442695
    %v2163 = vpow.pop %v2162
    %v2164 = vadd.f32 %v2163, 1.0
    %v2165 = vrcp.pop %v2164
    %v2166 = vmul.f32 1.0, %v2165
    %v2167 = vtanh.pop %v2160
    %v2168 = vmul.f32 %v2166, %v2077
    %2170 = vrot.lane.b32.xlu0 %v2167, 64
    %v2171 = vpop.permute.xlu0 %2170
    %v2173 = vmul.f32 %v2166, %v2171
    %2175 = vrot.lane.b32.xlu0 %v2173, 32
    %v2176 = vpop.permute.xlu0 %2175
    %v2178 = vadd.f32 %v2168, %v2176
    %v2179 = vtanh.pop %v2178
    %2181 = vrot.lane.b32.xlu0 %v2179, 64
    %v2182 = vpop.permute.xlu0 %2181
    %v2184 = vmul.f32 %v2166, %v2182
    %2186 = vrot.lane.b32.xlu0 %v2184, 32
    %v2187 = vpop.permute.xlu0 %2186
    %s2189 = scalar_lea.vmem [#allocation23], 8
    %2190 = vst.msk [vmem:[%s2189] sm:$0xff] %vm334, %v2187
    %2192 = vrot.lane.b32.xlu0 %v2178, 96
    %v2193 = vpop.permute.xlu0 %2192
    %s2195 = scalar_lea.vmem [#allocation25], 8
    %2196 = vst.msk [vmem:[%s2195] sm:$0xff] %vm334, %v2193
    %v2197 = vld [vmem:[#allocation20] sm:$0x1]
    %v2199 = vlaneseq
    %v2200 = vshrl.u32 %v2199, 7
    %v2201 = vsub.s32 0, %v2200
    %v2202 = vrot.slane %v2197, %v2201
    %2203 = vrot.lane.b32.xlu0 %v2202, 96
    %v2204 = vpop.permute.xlu0 %2203
    %v2206 = vmul.f32 %v2184, %v2204
    %2208 = vrot.lane.b32.xlu0 %v2206, 32
    %v2209 = vpop.permute.xlu0 %2208
    %v2211 = vsel %vm334, %v2209, 0.0
    %2212 = vadd.xlane.f32.xlu0 %v2211
    %v2213 = vpop.xlane.xlu0 %2212
    %v2214 = vld [vmem:[#allocation4] sm:$0x1]
    %v2216 = vlaneseq
    %v2217 = vshrl.u32 %v2216, 7
    %v2218 = vsub.s32 0, %v2217
    %v2219 = vrot.slane %v2214, %v2218
    %v2221 = vadd.f32 %v2213, %v2219
    %vm2222 = vcmask 7168
    %2223 = vst.msk [vmem:[#allocation22] sm:$0xff] %vm2222, %v2221
    // Predicated region
    $region86: #{tpu_custom_call.1} parent=1 // pred_check
      _
    $region87: #{tpu_custom_call.1} parent=1 // pred_check_branch
      %2225 = sbr.rel (0) target = $region89
    $region88: #{tpu_custom_call.1} parent=1 // pred_region
      %s2227 = ssub.s32 128, 128
      %2228 = vsyncadd [#allocation7], %s2227
      %s2230 = sshll.u32 [#allocation22], 4
      %s2231 = int_to_ptr.vmem [resolvable:$true] %s2230
      %2233 = dma.vmem_to_hbm [thread:$0]  %s2231, 128, %s11, [#allocation7]
    $region89: #{tpu_custom_call.1} parent=1 // pred_fallthru
      _
    // Predicated region
    $region90: #{tpu_custom_call.1} parent=1 // pred_check
      _
    $region91: #{tpu_custom_call.1} parent=1 // pred_check_branch
      %2235 = sbr.rel (0) target = $region93
    $region92: #{tpu_custom_call.1} parent=1 // pred_region
      %s2237 = ssub.s32 256, 256
      %2238 = vsyncadd [#allocation24], %s2237
      %s2239 = sshll.u32 [#allocation23], 4
      %s2240 = int_to_ptr.vmem [resolvable:$true] %s2239
      %2245 = dma.vmem_to_hbm [thread:$0]  %s2240, 256, %s12, [#allocation24], 128, 128, 8
    $region93: #{tpu_custom_call.1} parent=1 // pred_fallthru
      _
    // Predicated region
    $region94: #{tpu_custom_call.1} parent=1 // pred_check
      _
    $region95: #{tpu_custom_call.1} parent=1 // pred_check_branch
      %2247 = sbr.rel (0) target = $region97
    $region96: #{tpu_custom_call.1} parent=1 // pred_region
      %s2249 = ssub.s32 256, 256
      %2250 = vsyncadd [#allocation24], %s2249
      %s2251 = sshll.u32 [#allocation25], 4
      %s2252 = int_to_ptr.vmem [resolvable:$true] %s2251
      %2257 = dma.vmem_to_hbm [thread:$0]  %s2252, 256, %s13, [#allocation24], 128, 128, 8
    $region97: #{tpu_custom_call.1} parent=1 // pred_fallthru
      _
    // Predicated region
    $region98: #{tpu_custom_call.1} parent=1 // pred_check
      _
    $region99: #{tpu_custom_call.1} parent=1 // pred_check_branch
      %2259 = sbr.rel (0) target = $region101
    $region100: #{tpu_custom_call.1} parent=1 // pred_region
      %2260 = dma.done [#allocation7], 128
    $region101: #{tpu_custom_call.1} parent=1 // pred_fallthru
      _
    // Predicated region
    $region102: #{tpu_custom_call.1} parent=1 // pred_check
      _
    $region103: #{tpu_custom_call.1} parent=1 // pred_check_branch
      %2262 = sbr.rel (0) target = $region105
    $region104: #{tpu_custom_call.1} parent=1 // pred_region
      %2263 = dma.done [#allocation24], 256
    $region105: #{tpu_custom_call.1} parent=1 // pred_fallthru
      _
    // Predicated region
    $region106: #{tpu_custom_call.1} parent=1 // pred_check
      _
    $region107: #{tpu_custom_call.1} parent=1 // pred_check_branch
      %2265 = sbr.rel (0) target = $region109
    $region108: #{tpu_custom_call.1} parent=1 // pred_region
      %2266 = dma.done [#allocation24], 256
    $region109: #{tpu_custom_call.1} parent=1 // pred_fallthru
      _
    %2267 = vsyncpa [#allocation6], 1
    %2268 = vsyncpa [#allocation9], 1
    %2269 = vsyncpa [#allocation12], 1
    %2270 = vsyncpa [#allocation15], 1
    %2271 = vsyncpa [#allocation18], 1
    %2272 = vsyncpa [#allocation21], 1
    %2273 = vsyncpa [#allocation7], 1
    %2274 = vsyncpa [#allocation24], 1

</llo_original>
